<compile_context>
chip_gen: v7x
topology: tpu7x:2x2x1
jax: 0.10.0
libtpu: 0.0.40
codegen_flags: <defaults>
</compile_context>

<pallas_src>
import jax
import jax.numpy as jnp
from jax import lax
from jax.experimental import pallas as pl
from jax.experimental.pallas import tpu as pltpu

BN_EPS = 1e-5
LANE = 128    # feature dims padded to a multiple of the 128-lane vreg width
SUB = 8       # per-path adjacency blocks padded to a multiple of 8 sublanes

VMEM = pl.BlockSpec(memory_space=pltpu.MemorySpace.VMEM)
SMEM = pl.BlockSpec(memory_space=pltpu.MemorySpace.SMEM)


def _round_up(n, m):
    return ((n + m - 1) // m) * m


def _pad_to(x, shape):
    return jnp.pad(x, [(0, s - d) for d, s in zip(x.shape, shape)])


# ----------------------------- fused Pallas kernel ----------------------------------

def _make_fused_kernel(n_inter, go_off, num_paths):
    """Builds the fused HGIN-layer kernel, specialised (at trace time) to the
    per-path intermediate node counts `n_inter` and their aligned block offsets."""
    P = num_paths

    def mlp2(z, w1t, b1, g, beta, w2t, b2):
        # 2-layer MLP: Linear -> BatchNorm1d (training batch stats, biased var) -> ReLU -> Linear
        y = jnp.dot(z, w1t, preferred_element_type=jnp.float32) + b1
        mean = jnp.mean(y, axis=0, keepdims=True)
        var = jnp.mean((y - mean) ** 2, axis=0, keepdims=True)
        y = (y - mean) * lax.rsqrt(var + BN_EPS) * g + beta   # rsqrt -> EUP slot
        y = jnp.maximum(y, 0.0)
        return jnp.dot(y, w2t, preferred_element_type=jnp.float32) + b2

    def kernel(eps_ref, a_go_ref, a_ret_ref, h_tgt_ref, *rest):
        h_inter_refs = rest[0:P]
        wpt_ref, bp_ref = rest[P], rest[P + 1]
        W1T, B1, G, BETA, W2T, B2 = rest[P + 2:P + 8]          # stacked go-path MLPs
        rw1t, rb1, rg, rbeta, rw2t, rb2 = rest[P + 8:P + 14]   # 'Return' MLP
        out_tgt_ref = rest[P + 14]
        out_inter_refs = rest[P + 15:2 * P + 15]
        hcat_ref = rest[2 * P + 15]                            # VMEM scratch

        h_tgt = h_tgt_ref[...]

        # ---- go paths: copy_u + sum == A @ H_src.  All go paths share src == target,
        # so the per-etype aggregations are batched into ONE stacked matmul. ----------
        a_go = jnp.dot(a_go_ref[...], h_tgt, preferred_element_type=jnp.float32)

        # Clear the concat buffer once: padded rows only meet zero adjacency columns,
        # but scratch VMEM is uninitialised (NaN * 0 = NaN), so zero it.
        hcat_ref[...] = jnp.zeros_like(hcat_ref)

        for i in range(P):
            off, n = go_off[i], n_inter[i]
            z = (1.0 + eps_ref[i]) * h_inter_refs[i][...] + a_go[off:off + n, :]
            h_i = mlp2(z, W1T[i], B1[i], G[i], BETA[i], W2T[i], B2[i])
            out_inter_refs[i][...] = h_i          # lane-dense (.., 128) unmasked store
            hcat_ref[off:off + n, :] = h_i        # stage for the return aggregation

        # ---- return paths: multi_update_all(..., 'sum') onto the target ==
        # one stacked matmul over the concatenated (already-updated) source features. --
        a_t = jnp.dot(a_ret_ref[...], hcat_ref[...], preferred_element_type=jnp.float32)

        # ---- target node type: project, then GIN 'Return' update -------------------
        hp = jnp.dot(h_tgt, wpt_ref[...], preferred_element_type=jnp.float32) + bp_ref[...]
        z_t = (1.0 + eps_ref[P]) * hp + a_t
        out_tgt_ref[...] = mlp2(z_t, rw1t[...], rb1[...], rg[...], rbeta[...],
                                rw2t[...], rb2[...])

    return kernel


# ----------------------------- parameters -------------------------------------------

def _linear_params(key, in_f, out_f):
    kw, kb = jax.random.split(key)
    bound = 1.0 / (in_f ** 0.5)
    w = jax.random.uniform(kw, (out_f, in_f), jnp.float32, -bound, bound)
    b = jax.random.uniform(kb, (out_f,), jnp.float32, -bound, bound)
    return w, b


def _mlp_params(key, in_size, hidden, out_size):
    # MLP(num_layers=2, in_size, hidden_size=hidden, out_size)
    k1, k2 = jax.random.split(key)
    w1, b1 = _linear_params(k1, in_size, hidden)
    w2, b2 = _linear_params(k2, hidden, out_size)
    return dict(
        w1t=jnp.asarray(w1.T), b1=b1.reshape(1, -1),
        gamma=jnp.ones((1, hidden), jnp.float32),
        beta=jnp.zeros((1, hidden), jnp.float32),
        w2t=jnp.asarray(w2.T), b2=b2.reshape(1, -1),
    )


class HGINLayerPallas:
    """JAX/Pallas HGINLayer.  The heterograph is given as dense per-etype adjacencies
    [N_dst, N_src].  The whole forward pass runs as ONE fused pallas_call."""

    def __init__(self, key, paths, etype_meta, in_size, out_size, target_node_type):
        self.paths = [tuple(p) for p in paths]
        self.go_path = [p[0] for p in self.paths]
        self.return_path = [p[1] for p in self.paths]
        self.etype_meta = dict(etype_meta)           # etype -> (srctype, dsttype)
        self.target = target_node_type
        self.in_size, self.out_size = in_size, out_size
        self.dp_in = _round_up(in_size, LANE)        # lane-dense padded feature dims
        self.dp_out = _round_up(out_size, LANE)
        self.hp = self.dp_out                        # MLP hidden_size == out_size

        # The fused kernel assumes the usual HGIN metapath structure:
        #   go path    : target -> intermediate node type
        #   return path: that same intermediate node type -> target
        # TODO(synk): general heterographs (go paths not rooted at the target, or shared
        # intermediate node types across paths) would need extra sequencing.
        self.inter_types = []
        for ge, re_ in self.paths:
            gsrc, gdst = self.etype_meta[ge]
            rsrc, rdst = self.etype_meta[re_]
            assert gsrc == self.target and rdst == self.target and gdst == rsrc
            self.inter_types.append(gdst)
        assert len(set(self.inter_types)) == len(self.inter_types)

        P = len(self.go_path)
        keys = jax.random.split(key, P + 2)
        wp, bp = _linear_params(keys[0], in_size, out_size)
        self.project = dict(wt=jnp.asarray(wp.T), b=bp.reshape(1, -1))

        self.mlp, self.eps = {}, {}
        for i, name in enumerate(self.go_path):
            self.mlp[name] = _mlp_params(keys[i + 1], in_size, out_size, out_size)
            self.eps[name] = jnp.zeros((1,), jnp.float32)
        self.mlp["Return"] = _mlp_params(keys[-1], out_size, out_size, out_size)
        self.eps["Return"] = jnp.zeros((1,), jnp.float32)

        # ------- padded / stacked parameters (built once, reused every call) ---------
        self.wpt_p = _pad_to(self.project["wt"], (self.dp_in, self.dp_out))
        self.bp_p = _pad_to(self.project["b"], (1, self.dp_out))

        def _pad_mlp(p, d_in):
            return dict(
                w1t=_pad_to(p["w1t"], (d_in, self.hp)),
                b1=_pad_to(p["b1"], (1, self.hp)),
                gamma=_pad_to(p["gamma"], (1, self.hp)),
                beta=_pad_to(p["beta"], (1, self.hp)),
                w2t=_pad_to(p["w2t"], (self.hp, self.dp_out)),
                b2=_pad_to(p["b2"], (1, self.dp_out)),
            )

        go_padded = [_pad_mlp(self.mlp[name], self.dp_in) for name in self.go_path]
        self.go_stacked = {k: jnp.stack([p[k] for p in go_padded], axis=0)
                           for k in ("w1t", "b1", "gamma", "beta", "w2t", "b2")}
        self.ret_padded = _pad_mlp(self.mlp["Return"], self.dp_out)
        self.eps_vec = jnp.concatenate([self.eps[name] for name in self.go_path]
                                       + [self.eps["Return"]])

    def __call__(self, adj_dict, feat_dict):
        P = len(self.go_path)
        n_target = feat_dict[self.target].shape[0]
        n_inter = [feat_dict[t].shape[0] for t in self.inter_types]

        # Per-path blocks padded to multiples of 8 rows/cols -> sublane-aligned slices.
        go_off, off = [], 0
        for n in n_inter:
            go_off.append(off)
            off += _round_up(n, SUB)
        m_go = off

        # Stacked go adjacency   (sum_i pad8(N_i), N_target)  — rows = dst blocks.
        # Stacked return adjacency (N_target, sum_i pad8(N_i)) — cols = src blocks.
        a_go_blocks, a_ret_blocks = [], []
        for i, (ge, re_) in enumerate(self.paths):
            pad = _round_up(n_inter[i], SUB) - n_inter[i]
            a_go_blocks.append(jnp.pad(jnp.asarray(adj_dict[ge], jnp.float32),
                                       ((0, pad), (0, 0))))
            a_ret_blocks.append(jnp.pad(jnp.asarray(adj_dict[re_], jnp.float32),
                                        ((0, 0), (0, pad))))
        a_go = jnp.concatenate(a_go_blocks, axis=0)
        a_ret = jnp.concatenate(a_ret_blocks, axis=1)

        # Lane-dense (multiple-of-128) feature padding.  Zero-padded columns stay zero
        # through the whole padded computation; the node/BN axis is NOT padded.
        h_tgt_p = _pad_to(feat_dict[self.target], (n_target, self.dp_in))
        h_inter_p = [_pad_to(feat_dict[t], (feat_dict[t].shape[0], self.dp_in))
                     for t in self.inter_types]

        kernel = _make_fused_kernel(tuple(n_inter), tuple(go_off), P)
        gs = self.go_stacked
        rp = self.ret_padded
        out_shapes = ([jax.ShapeDtypeStruct((n_target, self.dp_out), jnp.float32)]
                      + [jax.ShapeDtypeStruct((n, self.dp_out), jnp.float32)
                         for n in n_inter])

        outs = pl.pallas_call(
            kernel,
            out_shape=out_shapes,
            in_specs=[SMEM] + [VMEM] * (3 + P + 2 + 6 + 6),
            out_specs=[VMEM] * (1 + P),
            scratch_shapes=[pltpu.VMEM((m_go, self.dp_out), jnp.float32)],
            # TODO(synk): for production-size graphs add a dst-node grid with
            # dimension_semantics=("parallel", ...) and an explicit vmem_limit_bytes;
            # BatchNorm stats would then need a two-pass / scratch-accumulated scheme.
        )(self.eps_vec, a_go, a_ret, h_tgt_p, *h_inter_p,
          self.wpt_p, self.bp_p,
          gs["w1t"], gs["b1"], gs["gamma"], gs["beta"], gs["w2t"], gs["b2"],
          rp["w1t"], rp["b1"], rp["gamma"], rp["beta"], rp["w2t"], rp["b2"])

        h = dict(feat_dict)
        h[self.target] = outs[0][:, :self.out_size]
        for i, t in enumerate(self.inter_types):
            h[t] = outs[1 + i][:, :self.out_size]
        return h


# ----------------------------- pure-JAX reference (sanity check) ---------------------

def _mlp2_ref(z, p):
    y = z @ p["w1t"] + p["b1"]
    mean = y.mean(axis=0, keepdims=True)
    var = ((y - mean) ** 2).mean(axis=0, keepdims=True)
    y = (y - mean) / jnp.sqrt(var + BN_EPS) * p["gamma"] + p["beta"]
    y = jnp.maximum(y, 0.0)
    return y @ p["w2t"] + p["b2"]


def _forward_ref(layer, adj_dict, feat_dict):
    h = dict(feat_dict)
    for etype in layer.go_path:
        src, dst = layer.etype_meta[etype]
        a = adj_dict[etype] @ h[src]
        h[dst] = _mlp2_ref((1.0 + layer.eps[etype][0]) * h[dst] + a, layer.mlp[etype])
    a_t = sum(adj_dict[e] @ h[layer.etype_meta[e][0]] for e in layer.return_path)
    hp = h[layer.target] @ layer.project["wt"] + layer.project["b"]
    h[layer.target] = _mlp2_ref((1.0 + layer.eps["Return"][0]) * hp + a_t,
                                layer.mlp["Return"])
    return h


# ----------------------------- main ---------------------------------------------------

if __name__ == "__main__":
    key = jax.random.PRNGKey(0)
    in_size, out_size = 32, 32
    n_target, n_item, n_tag = 16, 12, 8
    target_ntype = "target"

    # heterograph: target --t2i--> item --i2t--> target ; target --t2g--> tag --g2t--> target
    paths = [("t2i", "i2t"), ("t2g", "g2t")]
    etype_meta = {
        "t2i": ("target", "item"), "i2t": ("item", "target"),
        "t2g": ("target", "tag"),  "g2t": ("tag", "target"),
    }

    k_feat, k_adj, k_params = jax.random.split(key, 3)
    kf = jax.random.split(k_feat, 3)
    feat_dict = {
        "target": jax.random.normal(kf[0], (n_target, in_size), jnp.float32),
        "item":   jax.random.normal(kf[1], (n_item, in_size), jnp.float32),
        "tag":    jax.random.normal(kf[2], (n_tag, in_size), jnp.float32),
    }

    n_of = {"target": n_target, "item": n_item, "tag": n_tag}
    ka = jax.random.split(k_adj, 4)
    adj_dict = {}
    for kk, etype in zip(ka, ["t2i", "i2t", "t2g", "g2t"]):
        src, dst = etype_meta[etype]
        adj_dict[etype] = (jax.random.uniform(kk, (n_of[dst], n_of[src])) < 0.5
                           ).astype(jnp.float32)

    layer = HGINLayerPallas(k_params, paths, etype_meta, in_size, out_size, target_ntype)

    out = layer(adj_dict, feat_dict)
    jax.block_until_ready(out)

    # sanity check against the pure-JAX reference
    ref = _forward_ref(layer, adj_dict, feat_dict)
    for ntype in out:
        assert out[ntype].shape == ref[ntype].shape, ntype
        assert jnp.allclose(out[ntype], ref[ntype], atol=1e-3, rtol=1e-3), ntype

    print("KERNEL_OK")
</pallas_src>

<mosaic_0001>
module attributes {stable_mosaic.version = 11 : i64} {
  func.func @kernel(%arg0: memref<3xf32, #tpu.memory_space<smem>>, %arg1: memref<24x16xf32, #tpu.memory_space<vmem>>, %arg2: memref<16x24xf32, #tpu.memory_space<vmem>>, %arg3: memref<16x128xf32, #tpu.memory_space<vmem>>, %arg4: memref<12x128xf32, #tpu.memory_space<vmem>>, %arg5: memref<8x128xf32, #tpu.memory_space<vmem>>, %arg6: memref<128x128xf32, #tpu.memory_space<vmem>>, %arg7: memref<1x128xf32, #tpu.memory_space<vmem>>, %arg8: memref<2x128x128xf32, #tpu.memory_space<vmem>>, %arg9: memref<2x1x128xf32, #tpu.memory_space<vmem>>, %arg10: memref<2x1x128xf32, #tpu.memory_space<vmem>>, %arg11: memref<2x1x128xf32, #tpu.memory_space<vmem>>, %arg12: memref<2x128x128xf32, #tpu.memory_space<vmem>>, %arg13: memref<2x1x128xf32, #tpu.memory_space<vmem>>, %arg14: memref<128x128xf32, #tpu.memory_space<vmem>>, %arg15: memref<1x128xf32, #tpu.memory_space<vmem>>, %arg16: memref<1x128xf32, #tpu.memory_space<vmem>>, %arg17: memref<1x128xf32, #tpu.memory_space<vmem>>, %arg18: memref<128x128xf32, #tpu.memory_space<vmem>>, %arg19: memref<1x128xf32, #tpu.memory_space<vmem>>, %arg20: memref<16x128xf32, #tpu.memory_space<vmem>>, %arg21: memref<12x128xf32, #tpu.memory_space<vmem>>, %arg22: memref<8x128xf32, #tpu.memory_space<vmem>>, %arg23: memref<24x128xf32, #tpu.memory_space<vmem>>) attributes {dimension_semantics = [], scalar_prefetch = 0 : i64, scratch_operands = 1 : i64, tpu.core_type = #tpu.core_type<tc>} {
    %c0 = arith.constant 0 : index
    %c0_0 = arith.constant 0 : index
    %0 = vector.load %arg3[%c0, %c0_0] : memref<16x128xf32, #tpu.memory_space<vmem>>, vector<16x128xf32>
    %c0_1 = arith.constant 0 : index
    %c0_2 = arith.constant 0 : index
    %1 = vector.load %arg1[%c0_1, %c0_2] : memref<24x16xf32, #tpu.memory_space<vmem>>, vector<24x16xf32>
    %cst = arith.constant dense<0.000000e+00> : vector<24x128xf32>
    %2 = tpu.matmul %1, %0, %cst {dimension_numbers = #tpu.dot_dimension_numbers<[1], [0], [0], [1], [0, 0, 1, 1], [], []>} : vector<24x16xf32>, vector<16x128xf32>, vector<24x128xf32> -> vector<24x128xf32>
    %cst_3 = arith.constant 0.000000e+00 : f32
    %3 = vector.broadcast %cst_3 : f32 to vector<24x128xf32>
    %c0_4 = arith.constant 0 : index
    %c0_5 = arith.constant 0 : index
    %4 = vector.load %arg23[%c0_4, %c0_5] : memref<24x128xf32, #tpu.memory_space<vmem>>, vector<24x128xf32>
    tpu.vector_store %arg23[%c0_4, %c0_5], %3 {strides = array<i32>} : memref<24x128xf32, #tpu.memory_space<vmem>>, vector<24x128xf32>,
    %c0_6 = arith.constant 0 : index
    %5 = memref.load %arg0[%c0_6] : memref<3xf32, #tpu.memory_space<smem>>
    %cst_7 = arith.constant 1.000000e+00 : f32
    %6 = arith.addf %cst_7, %5 : f32
    %c0_8 = arith.constant 0 : index
    %c0_9 = arith.constant 0 : index
    %7 = vector.load %arg4[%c0_8, %c0_9] : memref<12x128xf32, #tpu.memory_space<vmem>>, vector<12x128xf32>
    %8 = vector.broadcast %6 : f32 to vector<12x128xf32>
    %9 = arith.mulf %8, %7 : vector<12x128xf32>
    %10 = vector.extract_strided_slice %2 {offsets = [0, 0], sizes = [12, 128], strides = [1, 1]} : vector<24x128xf32> to vector<12x128xf32>
    %11 = arith.addf %9, %10 : vector<12x128xf32>
    %c0_10 = arith.constant 0 : index
    %c0_11 = arith.constant 0 : index
    %c0_12 = arith.constant 0 : index
    %12 = vector.load %arg8[%c0_10, %c0_11, %c0_12] : memref<2x128x128xf32, #tpu.memory_space<vmem>>, vector<1x128x128xf32>
    %13 = vector.shape_cast %12 : vector<1x128x128xf32> to vector<128x128xf32>
    %c0_13 = arith.constant 0 : index
    %c0_14 = arith.constant 0 : index
    %c0_15 = arith.constant 0 : index
    %14 = vector.load %arg9[%c0_13, %c0_14, %c0_15] : memref<2x1x128xf32, #tpu.memory_space<vmem>>, vector<1x1x128xf32>
    %15 = vector.shape_cast %14 : vector<1x1x128xf32> to vector<1x128xf32>
    %c0_16 = arith.constant 0 : index
    %c0_17 = arith.constant 0 : index
    %c0_18 = arith.constant 0 : index
    %16 = vector.load %arg10[%c0_16, %c0_17, %c0_18] : memref<2x1x128xf32, #tpu.memory_space<vmem>>, vector<1x1x128xf32>
    %17 = vector.shape_cast %16 : vector<1x1x128xf32> to vector<1x128xf32>
    %c0_19 = arith.constant 0 : index
    %c0_20 = arith.constant 0 : index
    %c0_21 = arith.constant 0 : index
    %18 = vector.load %arg11[%c0_19, %c0_20, %c0_21] : memref<2x1x128xf32, #tpu.memory_space<vmem>>, vector<1x1x128xf32>
    %19 = vector.shape_cast %18 : vector<1x1x128xf32> to vector<1x128xf32>
    %c0_22 = arith.constant 0 : index
    %c0_23 = arith.constant 0 : index
    %c0_24 = arith.constant 0 : index
    %20 = vector.load %arg12[%c0_22, %c0_23, %c0_24] : memref<2x128x128xf32, #tpu.memory_space<vmem>>, vector<1x128x128xf32>
    %21 = vector.shape_cast %20 : vector<1x128x128xf32> to vector<128x128xf32>
    %c0_25 = arith.constant 0 : index
    %c0_26 = arith.constant 0 : index
    %c0_27 = arith.constant 0 : index
    %22 = vector.load %arg13[%c0_25, %c0_26, %c0_27] : memref<2x1x128xf32, #tpu.memory_space<vmem>>, vector<1x1x128xf32>
    %23 = vector.shape_cast %22 : vector<1x1x128xf32> to vector<1x128xf32>
    %cst_28 = arith.constant dense<0.000000e+00> : vector<12x128xf32>
    %24 = tpu.matmul %11, %13, %cst_28 {dimension_numbers = #tpu.dot_dimension_numbers<[1], [0], [0], [1], [0, 0, 1, 1], [], []>} : vector<12x128xf32>, vector<128x128xf32>, vector<12x128xf32> -> vector<12x128xf32>
    %25 = vector.broadcast %15 : vector<1x128xf32> to vector<12x128xf32>
    %26 = arith.addf %24, %25 : vector<12x128xf32>
    %cst_29 = arith.constant dense<0.000000e+00> : vector<128xf32>
    %27 = vector.multi_reduction <add>, %26, %cst_29 [0] : vector<12x128xf32> to vector<128xf32>
    %28 = vector.shape_cast %27 : vector<128xf32> to vector<1x128xf32>
    %cst_30 = arith.constant 1.200000e+01 : f32
    %29 = vector.broadcast %cst_30 : f32 to vector<1x128xf32>
    %30 = arith.divf %28, %29 : vector<1x128xf32>
    %31 = vector.broadcast %30 : vector<1x128xf32> to vector<12x128xf32>
    %32 = arith.subf %26, %31 : vector<12x128xf32>
    %33 = arith.mulf %32, %32 : vector<12x128xf32>
    %cst_31 = arith.constant dense<0.000000e+00> : vector<128xf32>
    %34 = vector.multi_reduction <add>, %33, %cst_31 [0] : vector<12x128xf32> to vector<128xf32>
    %35 = vector.shape_cast %34 : vector<128xf32> to vector<1x128xf32>
    %cst_32 = arith.constant 1.200000e+01 : f32
    %36 = vector.broadcast %cst_32 : f32 to vector<1x128xf32>
    %37 = arith.divf %35, %36 : vector<1x128xf32>
    %38 = vector.broadcast %30 : vector<1x128xf32> to vector<12x128xf32>
    %39 = arith.subf %26, %38 : vector<12x128xf32>
    %cst_33 = arith.constant 9.99999974E-6 : f32
    %40 = vector.broadcast %cst_33 : f32 to vector<1x128xf32>
    %41 = arith.addf %37, %40 : vector<1x128xf32>
    %42 = math.rsqrt %41 : vector<1x128xf32>
    %43 = vector.broadcast %42 : vector<1x128xf32> to vector<12x128xf32>
    %44 = arith.mulf %39, %43 : vector<12x128xf32>
    %45 = vector.broadcast %17 : vector<1x128xf32> to vector<12x128xf32>
    %46 = arith.mulf %44, %45 : vector<12x128xf32>
    %47 = vector.broadcast %19 : vector<1x128xf32> to vector<12x128xf32>
    %48 = arith.addf %46, %47 : vector<12x128xf32>
    %cst_34 = arith.constant 0.000000e+00 : f32
    %49 = vector.broadcast %cst_34 : f32 to vector<12x128xf32>
    %50 = arith.maximumf %48, %49 : vector<12x128xf32>
    %cst_35 = arith.constant dense<0.000000e+00> : vector<12x128xf32>
    %51 = tpu.matmul %50, %21, %cst_35 {dimension_numbers = #tpu.dot_dimension_numbers<[1], [0], [0], [1], [0, 0, 1, 1], [], []>} : vector<12x128xf32>, vector<128x128xf32>, vector<12x128xf32> -> vector<12x128xf32>
    %52 = vector.broadcast %23 : vector<1x128xf32> to vector<12x128xf32>
    %53 = arith.addf %51, %52 : vector<12x128xf32>
    %c0_36 = arith.constant 0 : index
    %c0_37 = arith.constant 0 : index
    %54 = vector.load %arg21[%c0_36, %c0_37] : memref<12x128xf32, #tpu.memory_space<vmem>>, vector<12x128xf32>
    tpu.vector_store %arg21[%c0_36, %c0_37], %53 {strides = array<i32>} : memref<12x128xf32, #tpu.memory_space<vmem>>, vector<12x128xf32>,
    %c0_38 = arith.constant 0 : index
    %c0_39 = arith.constant 0 : index
    %55 = vector.load %arg23[%c0_38, %c0_39] : memref<24x128xf32, #tpu.memory_space<vmem>>, vector<12x128xf32>
    tpu.vector_store %arg23[%c0_38, %c0_39], %53 {strides = array<i32>} : memref<24x128xf32, #tpu.memory_space<vmem>>, vector<12x128xf32>,
    %c1 = arith.constant 1 : index
    %56 = memref.load %arg0[%c1] : memref<3xf32, #tpu.memory_space<smem>>
    %cst_40 = arith.constant 1.000000e+00 : f32
    %57 = arith.addf %cst_40, %56 : f32
    %c0_41 = arith.constant 0 : index
    %c0_42 = arith.constant 0 : index
    %58 = vector.load %arg5[%c0_41, %c0_42] : memref<8x128xf32, #tpu.memory_space<vmem>>, vector<8x128xf32>
    %59 = vector.broadcast %57 : f32 to vector<8x128xf32>
    %60 = arith.mulf %59, %58 : vector<8x128xf32>
    %61 = vector.extract_strided_slice %2 {offsets = [16, 0], sizes = [8, 128], strides = [1, 1]} : vector<24x128xf32> to vector<8x128xf32>
    %62 = arith.addf %60, %61 : vector<8x128xf32>
    %c1_43 = arith.constant 1 : index
    %c0_44 = arith.constant 0 : index
    %c0_45 = arith.constant 0 : index
    %63 = vector.load %arg8[%c1_43, %c0_44, %c0_45] : memref<2x128x128xf32, #tpu.memory_space<vmem>>, vector<1x128x128xf32>
    %64 = vector.shape_cast %63 : vector<1x128x128xf32> to vector<128x128xf32>
    %c1_46 = arith.constant 1 : index
    %c0_47 = arith.constant 0 : index
    %c0_48 = arith.constant 0 : index
    %65 = vector.load %arg9[%c1_46, %c0_47, %c0_48] : memref<2x1x128xf32, #tpu.memory_space<vmem>>, vector<1x1x128xf32>
    %66 = vector.shape_cast %65 : vector<1x1x128xf32> to vector<1x128xf32>
    %c1_49 = arith.constant 1 : index
    %c0_50 = arith.constant 0 : index
    %c0_51 = arith.constant 0 : index
    %67 = vector.load %arg10[%c1_49, %c0_50, %c0_51] : memref<2x1x128xf32, #tpu.memory_space<vmem>>, vector<1x1x128xf32>
    %68 = vector.shape_cast %67 : vector<1x1x128xf32> to vector<1x128xf32>
    %c1_52 = arith.constant 1 : index
    %c0_53 = arith.constant 0 : index
    %c0_54 = arith.constant 0 : index
    %69 = vector.load %arg11[%c1_52, %c0_53, %c0_54] : memref<2x1x128xf32, #tpu.memory_space<vmem>>, vector<1x1x128xf32>
    %70 = vector.shape_cast %69 : vector<1x1x128xf32> to vector<1x128xf32>
    %c1_55 = arith.constant 1 : index
    %c0_56 = arith.constant 0 : index
    %c0_57 = arith.constant 0 : index
    %71 = vector.load %arg12[%c1_55, %c0_56, %c0_57] : memref<2x128x128xf32, #tpu.memory_space<vmem>>, vector<1x128x128xf32>
    %72 = vector.shape_cast %71 : vector<1x128x128xf32> to vector<128x128xf32>
    %c1_58 = arith.constant 1 : index
    %c0_59 = arith.constant 0 : index
    %c0_60 = arith.constant 0 : index
    %73 = vector.load %arg13[%c1_58, %c0_59, %c0_60] : memref<2x1x128xf32, #tpu.memory_space<vmem>>, vector<1x1x128xf32>
    %74 = vector.shape_cast %73 : vector<1x1x128xf32> to vector<1x128xf32>
    %cst_61 = arith.constant dense<0.000000e+00> : vector<8x128xf32>
    %75 = tpu.matmul %62, %64, %cst_61 {dimension_numbers = #tpu.dot_dimension_numbers<[1], [0], [0], [1], [0, 0, 1, 1], [], []>} : vector<8x128xf32>, vector<128x128xf32>, vector<8x128xf32> -> vector<8x128xf32>
    %76 = vector.broadcast %66 : vector<1x128xf32> to vector<8x128xf32>
    %77 = arith.addf %75, %76 : vector<8x128xf32>
    %cst_62 = arith.constant dense<0.000000e+00> : vector<128xf32>
    %78 = vector.multi_reduction <add>, %77, %cst_62 [0] : vector<8x128xf32> to vector<128xf32>
    %79 = vector.shape_cast %78 : vector<128xf32> to vector<1x128xf32>
    %cst_63 = arith.constant 8.000000e+00 : f32
    %80 = vector.broadcast %cst_63 : f32 to vector<1x128xf32>
    %81 = arith.divf %79, %80 : vector<1x128xf32>
    %82 = vector.broadcast %81 : vector<1x128xf32> to vector<8x128xf32>
    %83 = arith.subf %77, %82 : vector<8x128xf32>
    %84 = arith.mulf %83, %83 : vector<8x128xf32>
    %cst_64 = arith.constant dense<0.000000e+00> : vector<128xf32>
    %85 = vector.multi_reduction <add>, %84, %cst_64 [0] : vector<8x128xf32> to vector<128xf32>
    %86 = vector.shape_cast %85 : vector<128xf32> to vector<1x128xf32>
    %cst_65 = arith.constant 8.000000e+00 : f32
    %87 = vector.broadcast %cst_65 : f32 to vector<1x128xf32>
    %88 = arith.divf %86, %87 : vector<1x128xf32>
    %89 = vector.broadcast %81 : vector<1x128xf32> to vector<8x128xf32>
    %90 = arith.subf %77, %89 : vector<8x128xf32>
    %cst_66 = arith.constant 9.99999974E-6 : f32
    %91 = vector.broadcast %cst_66 : f32 to vector<1x128xf32>
    %92 = arith.addf %88, %91 : vector<1x128xf32>
    %93 = math.rsqrt %92 : vector<1x128xf32>
    %94 = vector.broadcast %93 : vector<1x128xf32> to vector<8x128xf32>
    %95 = arith.mulf %90, %94 : vector<8x128xf32>
    %96 = vector.broadcast %68 : vector<1x128xf32> to vector<8x128xf32>
    %97 = arith.mulf %95, %96 : vector<8x128xf32>
    %98 = vector.broadcast %70 : vector<1x128xf32> to vector<8x128xf32>
    %99 = arith.addf %97, %98 : vector<8x128xf32>
    %cst_67 = arith.constant 0.000000e+00 : f32
    %100 = vector.broadcast %cst_67 : f32 to vector<8x128xf32>
    %101 = arith.maximumf %99, %100 : vector<8x128xf32>
    %cst_68 = arith.constant dense<0.000000e+00> : vector<8x128xf32>
    %102 = tpu.matmul %101, %72, %cst_68 {dimension_numbers = #tpu.dot_dimension_numbers<[1], [0], [0], [1], [0, 0, 1, 1], [], []>} : vector<8x128xf32>, vector<128x128xf32>, vector<8x128xf32> -> vector<8x128xf32>
    %103 = vector.broadcast %74 : vector<1x128xf32> to vector<8x128xf32>
    %104 = arith.addf %102, %103 : vector<8x128xf32>
    %c0_69 = arith.constant 0 : index
    %c0_70 = arith.constant 0 : index
    %105 = vector.load %arg22[%c0_69, %c0_70] : memref<8x128xf32, #tpu.memory_space<vmem>>, vector<8x128xf32>
    tpu.vector_store %arg22[%c0_69, %c0_70], %104 {strides = array<i32>} : memref<8x128xf32, #tpu.memory_space<vmem>>, vector<8x128xf32>,
    %c16 = arith.constant 16 : index
    %c0_71 = arith.constant 0 : index
    %106 = vector.load %arg23[%c16, %c0_71] : memref<24x128xf32, #tpu.memory_space<vmem>>, vector<8x128xf32>
    tpu.vector_store %arg23[%c16, %c0_71], %104 {strides = array<i32>} : memref<24x128xf32, #tpu.memory_space<vmem>>, vector<8x128xf32>,
    %c0_72 = arith.constant 0 : index
    %c0_73 = arith.constant 0 : index
    %107 = vector.load %arg2[%c0_72, %c0_73] : memref<16x24xf32, #tpu.memory_space<vmem>>, vector<16x24xf32>
    %c0_74 = arith.constant 0 : index
    %c0_75 = arith.constant 0 : index
    %108 = vector.load %arg23[%c0_74, %c0_75] : memref<24x128xf32, #tpu.memory_space<vmem>>, vector<24x128xf32>
    %cst_76 = arith.constant dense<0.000000e+00> : vector<16x128xf32>
    %109 = tpu.matmul %107, %108, %cst_76 {dimension_numbers = #tpu.dot_dimension_numbers<[1], [0], [0], [1], [0, 0, 1, 1], [], []>} : vector<16x24xf32>, vector<24x128xf32>, vector<16x128xf32> -> vector<16x128xf32>
    %c0_77 = arith.constant 0 : index
    %c0_78 = arith.constant 0 : index
    %110 = vector.load %arg6[%c0_77, %c0_78] : memref<128x128xf32, #tpu.memory_space<vmem>>, vector<128x128xf32>
    %cst_79 = arith.constant dense<0.000000e+00> : vector<16x128xf32>
    %111 = tpu.matmul %0, %110, %cst_79 {dimension_numbers = #tpu.dot_dimension_numbers<[1], [0], [0], [1], [0, 0, 1, 1], [], []>} : vector<16x128xf32>, vector<128x128xf32>, vector<16x128xf32> -> vector<16x128xf32>
    %c0_80 = arith.constant 0 : index
    %c0_81 = arith.constant 0 : index
    %112 = vector.load %arg7[%c0_80, %c0_81] : memref<1x128xf32, #tpu.memory_space<vmem>>, vector<1x128xf32>
    %113 = vector.broadcast %112 : vector<1x128xf32> to vector<16x128xf32>
    %114 = arith.addf %111, %113 : vector<16x128xf32>
    %c2 = arith.constant 2 : index
    %115 = memref.load %arg0[%c2] : memref<3xf32, #tpu.memory_space<smem>>
    %cst_82 = arith.constant 1.000000e+00 : f32
    %116 = arith.addf %cst_82, %115 : f32
    %117 = vector.broadcast %116 : f32 to vector<16x128xf32>
    %118 = arith.mulf %117, %114 : vector<16x128xf32>
    %119 = arith.addf %118, %109 : vector<16x128xf32>
    %c0_83 = arith.constant 0 : index
    %c0_84 = arith.constant 0 : index
    %120 = vector.load %arg14[%c0_83, %c0_84] : memref<128x128xf32, #tpu.memory_space<vmem>>, vector<128x128xf32>
    %c0_85 = arith.constant 0 : index
    %c0_86 = arith.constant 0 : index
    %121 = vector.load %arg15[%c0_85, %c0_86] : memref<1x128xf32, #tpu.memory_space<vmem>>, vector<1x128xf32>
    %c0_87 = arith.constant 0 : index
    %c0_88 = arith.constant 0 : index
    %122 = vector.load %arg16[%c0_87, %c0_88] : memref<1x128xf32, #tpu.memory_space<vmem>>, vector<1x128xf32>
    %c0_89 = arith.constant 0 : index
    %c0_90 = arith.constant 0 : index
    %123 = vector.load %arg17[%c0_89, %c0_90] : memref<1x128xf32, #tpu.memory_space<vmem>>, vector<1x128xf32>
    %c0_91 = arith.constant 0 : index
    %c0_92 = arith.constant 0 : index
    %124 = vector.load %arg18[%c0_91, %c0_92] : memref<128x128xf32, #tpu.memory_space<vmem>>, vector<128x128xf32>
    %c0_93 = arith.constant 0 : index
    %c0_94 = arith.constant 0 : index
    %125 = vector.load %arg19[%c0_93, %c0_94] : memref<1x128xf32, #tpu.memory_space<vmem>>, vector<1x128xf32>
    %cst_95 = arith.constant dense<0.000000e+00> : vector<16x128xf32>
    %126 = tpu.matmul %119, %120, %cst_95 {dimension_numbers = #tpu.dot_dimension_numbers<[1], [0], [0], [1], [0, 0, 1, 1], [], []>} : vector<16x128xf32>, vector<128x128xf32>, vector<16x128xf32> -> vector<16x128xf32>
    %127 = vector.broadcast %121 : vector<1x128xf32> to vector<16x128xf32>
    %128 = arith.addf %126, %127 : vector<16x128xf32>
    %cst_96 = arith.constant dense<0.000000e+00> : vector<128xf32>
    %129 = vector.multi_reduction <add>, %128, %cst_96 [0] : vector<16x128xf32> to vector<128xf32>
    %130 = vector.shape_cast %129 : vector<128xf32> to vector<1x128xf32>
    %cst_97 = arith.constant 1.600000e+01 : f32
    %131 = vector.broadcast %cst_97 : f32 to vector<1x128xf32>
    %132 = arith.divf %130, %131 : vector<1x128xf32>
    %133 = vector.broadcast %132 : vector<1x128xf32> to vector<16x128xf32>
    %134 = arith.subf %128, %133 : vector<16x128xf32>
    %135 = arith.mulf %134, %134 : vector<16x128xf32>
    %cst_98 = arith.constant dense<0.000000e+00> : vector<128xf32>
    %136 = vector.multi_reduction <add>, %135, %cst_98 [0] : vector<16x128xf32> to vector<128xf32>
    %137 = vector.shape_cast %136 : vector<128xf32> to vector<1x128xf32>
    %cst_99 = arith.constant 1.600000e+01 : f32
    %138 = vector.broadcast %cst_99 : f32 to vector<1x128xf32>
    %139 = arith.divf %137, %138 : vector<1x128xf32>
    %140 = vector.broadcast %132 : vector<1x128xf32> to vector<16x128xf32>
    %141 = arith.subf %128, %140 : vector<16x128xf32>
    %cst_100 = arith.constant 9.99999974E-6 : f32
    %142 = vector.broadcast %cst_100 : f32 to vector<1x128xf32>
    %143 = arith.addf %139, %142 : vector<1x128xf32>
    %144 = math.rsqrt %143 : vector<1x128xf32>
    %145 = vector.broadcast %144 : vector<1x128xf32> to vector<16x128xf32>
    %146 = arith.mulf %141, %145 : vector<16x128xf32>
    %147 = vector.broadcast %122 : vector<1x128xf32> to vector<16x128xf32>
    %148 = arith.mulf %146, %147 : vector<16x128xf32>
    %149 = vector.broadcast %123 : vector<1x128xf32> to vector<16x128xf32>
    %150 = arith.addf %148, %149 : vector<16x128xf32>
    %cst_101 = arith.constant 0.000000e+00 : f32
    %151 = vector.broadcast %cst_101 : f32 to vector<16x128xf32>
    %152 = arith.maximumf %150, %151 : vector<16x128xf32>
    %cst_102 = arith.constant dense<0.000000e+00> : vector<16x128xf32>
    %153 = tpu.matmul %152, %124, %cst_102 {dimension_numbers = #tpu.dot_dimension_numbers<[1], [0], [0], [1], [0, 0, 1, 1], [], []>} : vector<16x128xf32>, vector<128x128xf32>, vector<16x128xf32> -> vector<16x128xf32>
    %154 = vector.broadcast %125 : vector<1x128xf32> to vector<16x128xf32>
    %155 = arith.addf %153, %154 : vector<16x128xf32>
    %c0_103 = arith.constant 0 : index
    %c0_104 = arith.constant 0 : index
    %156 = vector.load %arg20[%c0_103, %c0_104] : memref<16x128xf32, #tpu.memory_space<vmem>>, vector<16x128xf32>
    tpu.vector_store %arg20[%c0_103, %c0_104], %155 {strides = array<i32>} : memref<16x128xf32, #tpu.memory_space<vmem>>, vector<16x128xf32>,
    return
  }
}

</mosaic_0001>

<llo_original>
// kernel: tpu_custom_call.1
$region0: #{tpu_custom_call.1}
  #allocation0 [shape = 'u32[]', space=smem, size = 0x4, offset = 0x4, fixed_abs, tag = 'smem constant byte address 0x4 - core index']
  #allocation1 [shape = 'u32[144,128]{1,0:T(1,128)}', space=vmem, size = 0x12000, scoped, tag = 'internal scratch']
  #allocation2 [shape = 'f32[24,128]{1,0:T(8,128)}', space=vmem, size = 0x3000, scoped, tag = 'scratch operand']
  %s0 = inlined_call_operand.hbm [shape: f32[3], index: 0, kind: input, shape index: {}]
  %s1 = inlined_call_operand.vmem [shape: f32[24,16], index: 1, kind: input, shape index: {}]
  %s2 = inlined_call_operand.vmem [shape: f32[16,24], index: 2, kind: input, shape index: {}]
  %s3 = inlined_call_operand.vmem [shape: f32[16,128], index: 3, kind: input, shape index: {}]
  %s4 = inlined_call_operand.vmem [shape: f32[12,128], index: 4, kind: input, shape index: {}]
  %s5 = inlined_call_operand.vmem [shape: f32[8,128], index: 5, kind: input, shape index: {}]
  %s6 = inlined_call_operand.hbm [shape: f32[128,128], index: 6, kind: input, shape index: {}]
  %s7 = inlined_call_operand.vmem [shape: f32[1,128], index: 7, kind: input, shape index: {}]
  %s8 = inlined_call_operand.hbm [shape: f32[2,128,128], index: 8, kind: input, shape index: {}]
  %s9 = inlined_call_operand.vmem [shape: f32[2,1,128], index: 9, kind: input, shape index: {}]
  %s10 = inlined_call_operand.vmem [shape: f32[2,1,128], index: 10, kind: input, shape index: {}]
  %s11 = inlined_call_operand.vmem [shape: f32[2,1,128], index: 11, kind: input, shape index: {}]
  %s12 = inlined_call_operand.hbm [shape: f32[2,128,128], index: 12, kind: input, shape index: {}]
  %s13 = inlined_call_operand.vmem [shape: f32[2,1,128], index: 13, kind: input, shape index: {}]
  %s14 = inlined_call_operand.hbm [shape: f32[128,128], index: 14, kind: input, shape index: {}]
  %s15 = inlined_call_operand.vmem [shape: f32[1,128], index: 15, kind: input, shape index: {}]
  %s16 = inlined_call_operand.vmem [shape: f32[1,128], index: 16, kind: input, shape index: {}]
  %s17 = inlined_call_operand.vmem [shape: f32[1,128], index: 17, kind: input, shape index: {}]
  %s18 = inlined_call_operand.hbm [shape: f32[128,128], index: 18, kind: input, shape index: {}]
  %s19 = inlined_call_operand.vmem [shape: f32[1,128], index: 19, kind: input, shape index: {}]
  %s20 = inlined_call_operand.hbm [shape: f32[16,128], index: 20, kind: output, shape index: {0}]
  %s21 = inlined_call_operand.hbm [shape: f32[12,128], index: 21, kind: output, shape index: {1}]
  %s22 = inlined_call_operand.hbm [shape: f32[8,128], index: 22, kind: output, shape index: {2}]
  %23 = xla_tuple %s20, %s21, %s22
  %s24 = sld [smem:[#allocation0]]
  $region130: #{tpu_custom_call.1} parent=0
    _
  %s26 = ssub.s32 1, %s24
  %s27 = scalar_select 0, %s26, %s24
  $region1: #{tpu_custom_call.1} parent=0
    #allocation3 [shape = 'u8[512]{0}', space=smem, size = 0x200, scoped, tag = 'input window, operand 0, single buffered']
    #allocation4 [shape = 's32[1]{0}', space=sflag, size = 0x4, scoped, tag = 'scoped memory for tpu_custom_call.1']
    #allocation5 [shape = 's32[1]{0}', space=sflag, size = 0x4, scoped, tag = 'scoped memory for tpu_custom_call.1']
    #allocation6 [shape = 's32[1]{0}', space=sflag, size = 0x4, scoped, tag = 'scoped memory for tpu_custom_call.1']
    #allocation7 [shape = 'u8[65536]{0}', space=vmem, size = 0x10000, scoped, tag = 'input window, operand 6, single buffered']
    #allocation8 [shape = 'u8[131072]{0}', space=vmem, size = 0x20000, scoped, tag = 'input window, operand 8, single buffered']
    #allocation9 [shape = 's32[1]{0}', space=sflag, size = 0x4, scoped, tag = 'scoped memory for tpu_custom_call.1']
    #allocation10 [shape = 'u8[131072]{0}', space=vmem, size = 0x20000, scoped, tag = 'input window, operand 12, single buffered']
    #allocation11 [shape = 'u8[65536]{0}', space=vmem, size = 0x10000, scoped, tag = 'input window, operand 14, single buffered']
    #allocation12 [shape = 's32[1]{0}', space=sflag, size = 0x4, scoped, tag = 'scoped memory for tpu_custom_call.1']
    #allocation13 [shape = 'u8[65536]{0}', space=vmem, size = 0x10000, scoped, tag = 'input window, operand 18, single buffered']
    #allocation14 [shape = 'u8[8192]{0}', space=vmem, size = 0x2000, scoped, tag = 'output window, operand 0, single buffered']
    #allocation15 [shape = 'u8[8192]{0}', space=vmem, size = 0x2000, scoped, tag = 'output window, operand 1, single buffered']
    #allocation16 [shape = 's32[1]{0}', space=sflag, size = 0x4, scoped, tag = 'scoped memory for tpu_custom_call.1']
    #allocation17 [shape = 'u8[4096]{0}', space=vmem, size = 0x1000, scoped, tag = 'output window, operand 2, single buffered']
    %28 = vsyncpa [#allocation6], 0
    %29 = vsyncpa [#allocation4], 0
    %30 = vsyncpa [#allocation9], 0
    %31 = vsyncpa [#allocation12], 0
    %32 = vsyncpa [#allocation5], 0
    %33 = vsyncpa [#allocation16], 0
    // Predicated region
    $region2: #{tpu_custom_call.1} parent=1 // pred_check
      _
    $region3: #{tpu_custom_call.1} parent=1 // pred_check_branch
      %35 = sbr.rel (0) target = $region5
    $region4: #{tpu_custom_call.1} parent=1 // pred_region
      %s37 = ssub.s32 16, 16
      %38 = vsyncadd [#allocation6], %s37
      %41 = dma.hbm_to_smem %s0, 16, [#allocation3], [#allocation6]
    $region5: #{tpu_custom_call.1} parent=1 // pred_fallthru
      _
    // Predicated region
    $region6: #{tpu_custom_call.1} parent=1 // pred_check
      _
    $region7: #{tpu_custom_call.1} parent=1 // pred_check_branch
      %43 = sbr.rel (0) target = $region9
    $region8: #{tpu_custom_call.1} parent=1 // pred_region
      _
    $region9: #{tpu_custom_call.1} parent=1 // pred_fallthru
      _
    // Predicated region
    $region10: #{tpu_custom_call.1} parent=1 // pred_check
      _
    $region11: #{tpu_custom_call.1} parent=1 // pred_check_branch
      %45 = sbr.rel (0) target = $region13
    $region12: #{tpu_custom_call.1} parent=1 // pred_region
      _
    $region13: #{tpu_custom_call.1} parent=1 // pred_fallthru
      _
    // Predicated region
    $region14: #{tpu_custom_call.1} parent=1 // pred_check
      _
    $region15: #{tpu_custom_call.1} parent=1 // pred_check_branch
      %47 = sbr.rel (0) target = $region17
    $region16: #{tpu_custom_call.1} parent=1 // pred_region
      _
    $region17: #{tpu_custom_call.1} parent=1 // pred_fallthru
      _
    // Predicated region
    $region18: #{tpu_custom_call.1} parent=1 // pred_check
      _
    $region19: #{tpu_custom_call.1} parent=1 // pred_check_branch
      %49 = sbr.rel (0) target = $region21
    $region20: #{tpu_custom_call.1} parent=1 // pred_region
      _
    $region21: #{tpu_custom_call.1} parent=1 // pred_fallthru
      _
    // Predicated region
    $region22: #{tpu_custom_call.1} parent=1 // pred_check
      _
    $region23: #{tpu_custom_call.1} parent=1 // pred_check_branch
      %51 = sbr.rel (0) target = $region25
    $region24: #{tpu_custom_call.1} parent=1 // pred_region
      _
    $region25: #{tpu_custom_call.1} parent=1 // pred_fallthru
      _
    // Predicated region
    $region26: #{tpu_custom_call.1} parent=1 // pred_check
      _
    $region27: #{tpu_custom_call.1} parent=1 // pred_check_branch
      %53 = sbr.rel (0) target = $region29
    $region28: #{tpu_custom_call.1} parent=1 // pred_region
      %s55 = ssub.s32 2048, 2048
      %56 = vsyncadd [#allocation4], %s55
      %s57 = sshll.u32 [#allocation7], 4
      %s58 = int_to_ptr.vmem [resolvable:$true] %s57
      %63 = dma.hbm_to_vmem [thread:$0]  %s6, 2048, %s58, [#allocation4], 128, 128, 8
    $region29: #{tpu_custom_call.1} parent=1 // pred_fallthru
      _
    // Predicated region
    $region30: #{tpu_custom_call.1} parent=1 // pred_check
      _
    $region31: #{tpu_custom_call.1} parent=1 // pred_check_branch
      %65 = sbr.rel (0) target = $region33
    $region32: #{tpu_custom_call.1} parent=1 // pred_region
      _
    $region33: #{tpu_custom_call.1} parent=1 // pred_fallthru
      _
    // Predicated region
    $region34: #{tpu_custom_call.1} parent=1 // pred_check
      _
    $region35: #{tpu_custom_call.1} parent=1 // pred_check_branch
      %67 = sbr.rel (0) target = $region37
    $region36: #{tpu_custom_call.1} parent=1 // pred_region
      %s69 = ssub.s32 4096, 4096
      %70 = vsyncadd [#allocation9], %s69
      %s71 = sshll.u32 [#allocation8], 4
      %s72 = int_to_ptr.vmem [resolvable:$true] %s71
      %77 = dma.hbm_to_vmem [thread:$0]  %s8, 4096, %s72, [#allocation9], 128, 128, 8
    $region37: #{tpu_custom_call.1} parent=1 // pred_fallthru
      _
    // Predicated region
    $region38: #{tpu_custom_call.1} parent=1 // pred_check
      _
    $region39: #{tpu_custom_call.1} parent=1 // pred_check_branch
      %79 = sbr.rel (0) target = $region41
    $region40: #{tpu_custom_call.1} parent=1 // pred_region
      _
    $region41: #{tpu_custom_call.1} parent=1 // pred_fallthru
      _
    // Predicated region
    $region42: #{tpu_custom_call.1} parent=1 // pred_check
      _
    $region43: #{tpu_custom_call.1} parent=1 // pred_check_branch
      %81 = sbr.rel (0) target = $region45
    $region44: #{tpu_custom_call.1} parent=1 // pred_region
      _
    $region45: #{tpu_custom_call.1} parent=1 // pred_fallthru
      _
    // Predicated region
    $region46: #{tpu_custom_call.1} parent=1 // pred_check
      _
    $region47: #{tpu_custom_call.1} parent=1 // pred_check_branch
      %83 = sbr.rel (0) target = $region49
    $region48: #{tpu_custom_call.1} parent=1 // pred_region
      _
    $region49: #{tpu_custom_call.1} parent=1 // pred_fallthru
      _
    // Predicated region
    $region50: #{tpu_custom_call.1} parent=1 // pred_check
      _
    $region51: #{tpu_custom_call.1} parent=1 // pred_check_branch
      %85 = sbr.rel (0) target = $region53
    $region52: #{tpu_custom_call.1} parent=1 // pred_region
      %s87 = ssub.s32 4096, 4096
      %88 = vsyncadd [#allocation9], %s87
      %s89 = sshll.u32 [#allocation10], 4
      %s90 = int_to_ptr.vmem [resolvable:$true] %s89
      %95 = dma.hbm_to_vmem [thread:$0]  %s12, 4096, %s90, [#allocation9], 128, 128, 8
    $region53: #{tpu_custom_call.1} parent=1 // pred_fallthru
      _
    // Predicated region
    $region54: #{tpu_custom_call.1} parent=1 // pred_check
      _
    $region55: #{tpu_custom_call.1} parent=1 // pred_check_branch
      %97 = sbr.rel (0) target = $region57
    $region56: #{tpu_custom_call.1} parent=1 // pred_region
      _
    $region57: #{tpu_custom_call.1} parent=1 // pred_fallthru
      _
    // Predicated region
    $region58: #{tpu_custom_call.1} parent=1 // pred_check
      _
    $region59: #{tpu_custom_call.1} parent=1 // pred_check_branch
      %99 = sbr.rel (0) target = $region61
    $region60: #{tpu_custom_call.1} parent=1 // pred_region
      %s101 = ssub.s32 2048, 2048
      %102 = vsyncadd [#allocation12], %s101
      %s103 = sshll.u32 [#allocation11], 4
      %s104 = int_to_ptr.vmem [resolvable:$true] %s103
      %109 = dma.hbm_to_vmem [thread:$0]  %s14, 2048, %s104, [#allocation12], 128, 128, 8
    $region61: #{tpu_custom_call.1} parent=1 // pred_fallthru
      _
    // Predicated region
    $region62: #{tpu_custom_call.1} parent=1 // pred_check
      _
    $region63: #{tpu_custom_call.1} parent=1 // pred_check_branch
      %111 = sbr.rel (0) target = $region65
    $region64: #{tpu_custom_call.1} parent=1 // pred_region
      _
    $region65: #{tpu_custom_call.1} parent=1 // pred_fallthru
      _
    // Predicated region
    $region66: #{tpu_custom_call.1} parent=1 // pred_check
      _
    $region67: #{tpu_custom_call.1} parent=1 // pred_check_branch
      %113 = sbr.rel (0) target = $region69
    $region68: #{tpu_custom_call.1} parent=1 // pred_region
      _
    $region69: #{tpu_custom_call.1} parent=1 // pred_fallthru
      _
    // Predicated region
    $region70: #{tpu_custom_call.1} parent=1 // pred_check
      _
    $region71: #{tpu_custom_call.1} parent=1 // pred_check_branch
      %115 = sbr.rel (0) target = $region73
    $region72: #{tpu_custom_call.1} parent=1 // pred_region
      _
    $region73: #{tpu_custom_call.1} parent=1 // pred_fallthru
      _
    // Predicated region
    $region74: #{tpu_custom_call.1} parent=1 // pred_check
      _
    $region75: #{tpu_custom_call.1} parent=1 // pred_check_branch
      %117 = sbr.rel (0) target = $region77
    $region76: #{tpu_custom_call.1} parent=1 // pred_region
      %s119 = ssub.s32 2048, 2048
      %120 = vsyncadd [#allocation12], %s119
      %s121 = sshll.u32 [#allocation13], 4
      %s122 = int_to_ptr.vmem [resolvable:$true] %s121
      %127 = dma.hbm_to_vmem [thread:$0]  %s18, 2048, %s122, [#allocation12], 128, 128, 8
    $region77: #{tpu_custom_call.1} parent=1 // pred_fallthru
      _
    // Predicated region
    $region78: #{tpu_custom_call.1} parent=1 // pred_check
      _
    $region79: #{tpu_custom_call.1} parent=1 // pred_check_branch
      %129 = sbr.rel (0) target = $region81
    $region80: #{tpu_custom_call.1} parent=1 // pred_region
      _
    $region81: #{tpu_custom_call.1} parent=1 // pred_fallthru
      _
    // Predicated region
    $region82: #{tpu_custom_call.1} parent=1 // pred_check
      _
    $region83: #{tpu_custom_call.1} parent=1 // pred_check_branch
      %131 = sbr.rel (0) target = $region85
    $region84: #{tpu_custom_call.1} parent=1 // pred_region
      %132 = dma.done [#allocation6], 16
    $region85: #{tpu_custom_call.1} parent=1 // pred_fallthru
      _
    // Predicated region
    $region86: #{tpu_custom_call.1} parent=1 // pred_check
      _
    $region87: #{tpu_custom_call.1} parent=1 // pred_check_branch
      %134 = sbr.rel (0) target = $region89
    $region88: #{tpu_custom_call.1} parent=1 // pred_region
      %135 = dma.done [#allocation4], 2048
    $region89: #{tpu_custom_call.1} parent=1 // pred_fallthru
      _
    // Predicated region
    $region90: #{tpu_custom_call.1} parent=1 // pred_check
      _
    $region91: #{tpu_custom_call.1} parent=1 // pred_check_branch
      %137 = sbr.rel (0) target = $region93
    $region92: #{tpu_custom_call.1} parent=1 // pred_region
      %138 = dma.done [#allocation9], 4096
    $region93: #{tpu_custom_call.1} parent=1 // pred_fallthru
      _
    // Predicated region
    $region94: #{tpu_custom_call.1} parent=1 // pred_check
      _
    $region95: #{tpu_custom_call.1} parent=1 // pred_check_branch
      %140 = sbr.rel (0) target = $region97
    $region96: #{tpu_custom_call.1} parent=1 // pred_region
      %141 = dma.done [#allocation9], 4096
    $region97: #{tpu_custom_call.1} parent=1 // pred_fallthru
      _
    // Predicated region
    $region98: #{tpu_custom_call.1} parent=1 // pred_check
      _
    $region99: #{tpu_custom_call.1} parent=1 // pred_check_branch
      %143 = sbr.rel (0) target = $region101
    $region100: #{tpu_custom_call.1} parent=1 // pred_region
      %144 = dma.done [#allocation12], 2048
    $region101: #{tpu_custom_call.1} parent=1 // pred_fallthru
      _
    // Predicated region
    $region102: #{tpu_custom_call.1} parent=1 // pred_check
      _
    $region103: #{tpu_custom_call.1} parent=1 // pred_check_branch
      %146 = sbr.rel (0) target = $region105
    $region104: #{tpu_custom_call.1} parent=1 // pred_region
      %147 = dma.done [#allocation12], 2048
    $region105: #{tpu_custom_call.1} parent=1 // pred_fallthru
      _
    %148 = sfence
    %v149 = vld [vmem:[%s3] sm:$0xff]
    %v150 = vld [vmem:[%s3 + $0x8] sm:$0xff]
    %v151 = vld [vmem:[%s1] sm:$0xff]
    %v152 = vld [vmem:[%s1 + $0x8] sm:$0xff]
    %v153 = vld [vmem:[%s1 + $0x10] sm:$0xff]
    %vm154 = vcmask 130048
    %v156 = vsel %vm154, %v151, 0
    %v159 = vsel %vm154, %v152, 0
    %v162 = vsel %vm154, %v153, 0
    %164 = vmatprep.subr.mxu0 0.0
    %165 = vmatpush1.msra.mxu0 %v149
    %166 = vmatprep.subr.mxu0 0.0
    %167 = vmatpush1.msra.mxu0 %v150
    %168 = vmatprep.subr.mxu0 0.0
    %169 = vmatpush1.msra.mxu0 0.0
    %170 = vmatprep.subr.mxu0 0.0
    %171 = vmatpush1.msra.mxu0 0.0
    %172 = vmatprep.subr.mxu0 0.0
    %173 = vmatpush1.msra.mxu0 0.0
    %174 = vmatprep.subr.mxu0 0.0
    %175 = vmatpush1.msra.mxu0 0.0
    %176 = vmatprep.subr.mxu0 0.0
    %177 = vmatpush1.msra.mxu0 0.0
    %178 = vmatprep.subr.mxu0 0.0
    %179 = vmatpush1.msra.mxu0 0.0
    %180 = vmatprep.subr.mxu0 0.0
    %181 = vmatpush1.msra.mxu0 0.0
    %182 = vmatprep.subr.mxu0 0.0
    %183 = vmatpush1.msra.mxu0 0.0
    %184 = vmatprep.subr.mxu0 0.0
    %185 = vmatpush1.msra.mxu0 0.0
    %186 = vmatprep.subr.mxu0 0.0
    %187 = vmatpush1.msra.mxu0 0.0
    %188 = vmatprep.subr.mxu0 0.0
    %189 = vmatpush1.msra.mxu0 0.0
    %190 = vmatprep.subr.mxu0 0.0
    %191 = vmatpush1.msra.mxu0 0.0
    %192 = vmatprep.subr.mxu0 0.0
    %193 = vmatpush1.msra.mxu0 0.0
    %194 = vmatprep.subr.mxu0 0.0
    %195 = vmatpush1.msra.mxu0 0.0
    %196 = vmatprep.subr.mxu0 0.0
    %197 = vmatpush1.msra.mxu0 0.0
    %198 = vmatprep.subr.mxu0 0.0
    %199 = vmatpush1.msra.mxu0 0.0
    %200 = vmatprep.subr.mxu0 0.0
    %201 = vmatpush1.msra.mxu0 0.0
    %202 = vmatprep.subr.mxu0 0.0
    %203 = vmatpush1.msra.mxu0 0.0
    %204 = vmatprep.subr.mxu0 0.0
    %205 = vmatpush1.msra.mxu0 0.0
    %206 = vmatprep.subr.mxu0 0.0
    %207 = vmatpush1.msra.mxu0 0.0
    %208 = vmatprep.subr.mxu0 0.0
    %209 = vmatpush1.msra.mxu0 0.0
    %210 = vmatprep.subr.mxu0 0.0
    %211 = vmatpush1.msra.mxu0 0.0
    %212 = vmatprep.subr.mxu0 0.0
    %213 = vmatpush1.msra.mxu0 0.0
    %214 = vmatprep.subr.mxu0 0.0
    %215 = vmatpush1.msra.mxu0 0.0
    %216 = vmatprep.subr.mxu0 0.0
    %217 = vmatpush1.msra.mxu0 0.0
    %218 = vmatprep.subr.mxu0 0.0
    %219 = vmatpush1.msra.mxu0 0.0
    %220 = vmatprep.subr.mxu0 0.0
    %221 = vmatpush1.msra.mxu0 0.0
    %222 = vmatprep.subr.mxu0 0.0
    %223 = vmatpush1.msra.mxu0 0.0
    %224 = vmatprep.subr.mxu0 0.0
    %225 = vmatpush1.msra.mxu0 0.0
    %226 = vmatprep.subr.mxu0 0.0
    %227 = vmatpush1.msra.mxu0 0.0
    %228 = vmatprep.mubr.f32.mxu0 0.0
    %229 = vmatmul.mubr.f32.gmra.mrb[0].mxu0 %v156
    %v230 = vpop.f32.mrb[0].mxu0
    %v231 = vadd.f32 0.0, %v230
    %v232 = vpop.f32.mrb[0].mxu0
    %233 = vmatprep.mubr.f32.mxu0 0.0
    %234 = vmatmul.mubr.f32.gmra.mrb[0].mxu0 %v159
    %v235 = vpop.f32.mrb[0].mxu0
    %v236 = vadd.f32 0.0, %v235
    %v237 = vpop.f32.mrb[0].mxu0
    %238 = vmatprep.mubr.f32.mxu0 0.0
    %239 = vmatmul.mubr.f32.gmra.mrb[0].mxu0 %v162
    %v240 = vpop.f32.mrb[0].mxu0
    %v241 = vadd.f32 0.0, %v240
    %v242 = vpop.f32.mrb[0].mxu0
    %243 = vdwg.mxu0
    %244 = vst [vmem:[#allocation2] sm:$0xff] 0.0
    %245 = vst [vmem:[#allocation2 + $0x8] sm:$0xff] 0.0
    %246 = vst [vmem:[#allocation2 + $0x10] sm:$0xff] 0.0
    %s247 = sld [smem:[#allocation3]]
    %s248 = sadd.f32 %s247, 1.0
    %v249 = vld [vmem:[%s4] sm:$0xff]
    %v250 = vld [vmem:[%s4 + $0x8] sm:$0xf]
    %v251 = vstv %s248
    %v252 = vmul.f32 %v251, %v249
    %v253 = vmul.f32 %v251, %v250
    %v254 = vadd.f32 %v252, %v231
    %v255 = vadd.f32 %v253, %v236
    %v256 = vld [vmem:[#allocation8] sm:$0xff]
    %v257 = vld [vmem:[#allocation8 + $0x8] sm:$0xff]
    %v258 = vld [vmem:[#allocation8 + $0x10] sm:$0xff]
    %v259 = vld [vmem:[#allocation8 + $0x18] sm:$0xff]
    %v260 = vld [vmem:[#allocation8 + $0x20] sm:$0xff]
    %v261 = vld [vmem:[#allocation8 + $0x28] sm:$0xff]
    %v262 = vld [vmem:[#allocation8 + $0x30] sm:$0xff]
    %v263 = vld [vmem:[#allocation8 + $0x38] sm:$0xff]
    %v264 = vld [vmem:[#allocation8 + $0x40] sm:$0xff]
    %v265 = vld [vmem:[#allocation8 + $0x48] sm:$0xff]
    %v266 = vld [vmem:[#allocation8 + $0x50] sm:$0xff]
    %v267 = vld [vmem:[#allocation8 + $0x58] sm:$0xff]
    %v268 = vld [vmem:[#allocation8 + $0x60] sm:$0xff]
    %v269 = vld [vmem:[#allocation8 + $0x68] sm:$0xff]
    %v270 = vld [vmem:[#allocation8 + $0x70] sm:$0xff]
    %v271 = vld [vmem:[#allocation8 + $0x78] sm:$0xff]
    %v272 = vld [vmem:[%s9] sm:$0x1]
    %v273 = vld [vmem:[%s10] sm:$0x1]
    %v274 = vld [vmem:[%s11] sm:$0x1]
    %v275 = vld [vmem:[#allocation10] sm:$0xff]
    %v276 = vld [vmem:[#allocation10 + $0x8] sm:$0xff]
    %v277 = vld [vmem:[#allocation10 + $0x10] sm:$0xff]
    %v278 = vld [vmem:[#allocation10 + $0x18] sm:$0xff]
    %v279 = vld [vmem:[#allocation10 + $0x20] sm:$0xff]
    %v280 = vld [vmem:[#allocation10 + $0x28] sm:$0xff]
    %v281 = vld [vmem:[#allocation10 + $0x30] sm:$0xff]
    %v282 = vld [vmem:[#allocation10 + $0x38] sm:$0xff]
    %v283 = vld [vmem:[#allocation10 + $0x40] sm:$0xff]
    %v284 = vld [vmem:[#allocation10 + $0x48] sm:$0xff]
    %v285 = vld [vmem:[#allocation10 + $0x50] sm:$0xff]
    %v286 = vld [vmem:[#allocation10 + $0x58] sm:$0xff]
    %v287 = vld [vmem:[#allocation10 + $0x60] sm:$0xff]
    %v288 = vld [vmem:[#allocation10 + $0x68] sm:$0xff]
    %v289 = vld [vmem:[#allocation10 + $0x70] sm:$0xff]
    %v290 = vld [vmem:[#allocation10 + $0x78] sm:$0xff]
    %v291 = vld [vmem:[%s13] sm:$0x1]
    %v293 = vlaneseq
    %v294 = vshrl.u32 %v293, 7
    %v295 = vsub.s32 0, %v294
    %v296 = vrot.slane %v272, %v295
    %298 = vmatprep.subr.mxu0 0.0
    %299 = vmatpush1.msra.mxu0 %v256
    %300 = vmatprep.subr.mxu0 0.0
    %301 = vmatpush1.msra.mxu0 %v257
    %302 = vmatprep.subr.mxu0 0.0
    %303 = vmatpush1.msra.mxu0 %v258
    %304 = vmatprep.subr.mxu0 0.0
    %305 = vmatpush1.msra.mxu0 %v259
    %306 = vmatprep.subr.mxu0 0.0
    %307 = vmatpush1.msra.mxu0 %v260
    %308 = vmatprep.subr.mxu0 0.0
    %309 = vmatpush1.msra.mxu0 %v261
    %310 = vmatprep.subr.mxu0 0.0
    %311 = vmatpush1.msra.mxu0 %v262
    %312 = vmatprep.subr.mxu0 0.0
    %313 = vmatpush1.msra.mxu0 %v263
    %314 = vmatprep.subr.mxu0 0.0
    %315 = vmatpush1.msra.mxu0 %v264
    %316 = vmatprep.subr.mxu0 0.0
    %317 = vmatpush1.msra.mxu0 %v265
    %318 = vmatprep.subr.mxu0 0.0
    %319 = vmatpush1.msra.mxu0 %v266
    %320 = vmatprep.subr.mxu0 0.0
    %321 = vmatpush1.msra.mxu0 %v267
    %322 = vmatprep.subr.mxu0 0.0
    %323 = vmatpush1.msra.mxu0 %v268
    %324 = vmatprep.subr.mxu0 0.0
    %325 = vmatpush1.msra.mxu0 %v269
    %326 = vmatprep.subr.mxu0 0.0
    %327 = vmatpush1.msra.mxu0 %v270
    %328 = vmatprep.subr.mxu0 0.0
    %329 = vmatpush1.msra.mxu0 %v271
    %330 = vmatprep.subr.mxu0 0.0
    %331 = vmatpush1.msra.mxu0 0.0
    %332 = vmatprep.subr.mxu0 0.0
    %333 = vmatpush1.msra.mxu0 0.0
    %334 = vmatprep.subr.mxu0 0.0
    %335 = vmatpush1.msra.mxu0 0.0
    %336 = vmatprep.subr.mxu0 0.0
    %337 = vmatpush1.msra.mxu0 0.0
    %338 = vmatprep.subr.mxu0 0.0
    %339 = vmatpush1.msra.mxu0 0.0
    %340 = vmatprep.subr.mxu0 0.0
    %341 = vmatpush1.msra.mxu0 0.0
    %342 = vmatprep.subr.mxu0 0.0
    %343 = vmatpush1.msra.mxu0 0.0
    %344 = vmatprep.subr.mxu0 0.0
    %345 = vmatpush1.msra.mxu0 0.0
    %346 = vmatprep.subr.mxu0 0.0
    %347 = vmatpush1.msra.mxu0 0.0
    %348 = vmatprep.subr.mxu0 0.0
    %349 = vmatpush1.msra.mxu0 0.0
    %350 = vmatprep.subr.mxu0 0.0
    %351 = vmatpush1.msra.mxu0 0.0
    %352 = vmatprep.subr.mxu0 0.0
    %353 = vmatpush1.msra.mxu0 0.0
    %354 = vmatprep.subr.mxu0 0.0
    %355 = vmatpush1.msra.mxu0 0.0
    %356 = vmatprep.subr.mxu0 0.0
    %357 = vmatpush1.msra.mxu0 0.0
    %358 = vmatprep.subr.mxu0 0.0
    %359 = vmatpush1.msra.mxu0 0.0
    %360 = vmatprep.subr.mxu0 0.0
    %361 = vmatpush1.msra.mxu0 0.0
    %362 = vmatprep.mubr.f32.mxu0 0.0
    %363 = vmatmul.mubr.f32.gmra.mrb[0].mxu0 %v254
    %v364 = vpop.f32.mrb[0].mxu0
    %v365 = vadd.f32 %v296, %v364
    %v366 = vpop.f32.mrb[0].mxu0
    %367 = vmatprep.mubr.f32.mxu0 0.0
    %368 = vmatmul.mubr.f32.gmra.mrb[0].mxu0 %v255
    %v369 = vpop.f32.mrb[0].mxu0
    %v370 = vadd.f32 %v296, %v369
    %v371 = vpop.f32.mrb[0].mxu0
    %372 = vdwg.mxu0
    %vm373 = vcmask 1043456
    %v374 = vsel %vm373, %v370, 0.0
    %v375 = vadd.f32 %v365, %v374
    %v376 = vrot.slane %v375, 4
    %v377 = vadd.f32 %v375, %v376
    %v378 = vrot.slane %v377, 2
    %v379 = vadd.f32 %v377, %v378
    %v380 = vrot.slane %v379, 1
    %v381 = vadd.f32 %v379, %v380
    %v382 = vrcp.pop 12.0
    %v383 = vmul.f32 %v381, %v382
    %v384 = vsub.f32 %v365, %v383
    %v385 = vsub.f32 %v370, %v383
    %v386 = vmul.f32 %v384, %v384
    %v387 = vmul.f32 %v385, %v385
    %v388 = vsel %vm373, %v387, 0.0
    %v389 = vadd.f32 %v386, %v388
    %v390 = vrot.slane %v389, 4
    %v391 = vadd.f32 %v389, %v390
    %v392 = vrot.slane %v391, 2
    %v393 = vadd.f32 %v391, %v392
    %v394 = vrot.slane %v393, 1
    %v395 = vadd.f32 %v393, %v394
    %v396 = vmul.f32 %v395, %v382
    %v397 = vadd.f32 %v396, 1e-05
    %v398 = vrsqrt.pop %v397
    %v399 = vmul.f32 %v384, %v398
    %v400 = vmul.f32 %v385, %v398
    %v402 = vlaneseq
    %v403 = vshrl.u32 %v402, 7
    %v404 = vsub.s32 0, %v403
    %v405 = vrot.slane %v273, %v404
    %v407 = vmul.f32 %v399, %v405
    %v408 = vmul.f32 %v400, %v405
    %v410 = vlaneseq
    %v411 = vshrl.u32 %v410, 7
    %v412 = vsub.s32 0, %v411
    %v413 = vrot.slane %v274, %v412
    %v415 = vadd.f32 %v407, %v413
    %v416 = vadd.f32 %v408, %v413
    %v417 = vmax.f32 %v415, 0.0
    %v418 = vmax.f32 %v416, 0.0
    %v420 = vlaneseq
    %v421 = vshrl.u32 %v420, 7
    %v422 = vsub.s32 0, %v421
    %v423 = vrot.slane %v291, %v422
    %425 = vmatprep.subr.mxu0 0.0
    %426 = vmatpush1.msra.mxu0 %v275
    %427 = vmatprep.subr.mxu0 0.0
    %428 = vmatpush1.msra.mxu0 %v276
    %429 = vmatprep.subr.mxu0 0.0
    %430 = vmatpush1.msra.mxu0 %v277
    %431 = vmatprep.subr.mxu0 0.0
    %432 = vmatpush1.msra.mxu0 %v278
    %433 = vmatprep.subr.mxu0 0.0
    %434 = vmatpush1.msra.mxu0 %v279
    %435 = vmatprep.subr.mxu0 0.0
    %436 = vmatpush1.msra.mxu0 %v280
    %437 = vmatprep.subr.mxu0 0.0
    %438 = vmatpush1.msra.mxu0 %v281
    %439 = vmatprep.subr.mxu0 0.0
    %440 = vmatpush1.msra.mxu0 %v282
    %441 = vmatprep.subr.mxu0 0.0
    %442 = vmatpush1.msra.mxu0 %v283
    %443 = vmatprep.subr.mxu0 0.0
    %444 = vmatpush1.msra.mxu0 %v284
    %445 = vmatprep.subr.mxu0 0.0
    %446 = vmatpush1.msra.mxu0 %v285
    %447 = vmatprep.subr.mxu0 0.0
    %448 = vmatpush1.msra.mxu0 %v286
    %449 = vmatprep.subr.mxu0 0.0
    %450 = vmatpush1.msra.mxu0 %v287
    %451 = vmatprep.subr.mxu0 0.0
    %452 = vmatpush1.msra.mxu0 %v288
    %453 = vmatprep.subr.mxu0 0.0
    %454 = vmatpush1.msra.mxu0 %v289
    %455 = vmatprep.subr.mxu0 0.0
    %456 = vmatpush1.msra.mxu0 %v290
    %457 = vmatprep.subr.mxu0 0.0
    %458 = vmatpush1.msra.mxu0 0.0
    %459 = vmatprep.subr.mxu0 0.0
    %460 = vmatpush1.msra.mxu0 0.0
    %461 = vmatprep.subr.mxu0 0.0
    %462 = vmatpush1.msra.mxu0 0.0
    %463 = vmatprep.subr.mxu0 0.0
    %464 = vmatpush1.msra.mxu0 0.0
    %465 = vmatprep.subr.mxu0 0.0
    %466 = vmatpush1.msra.mxu0 0.0
    %467 = vmatprep.subr.mxu0 0.0
    %468 = vmatpush1.msra.mxu0 0.0
    %469 = vmatprep.subr.mxu0 0.0
    %470 = vmatpush1.msra.mxu0 0.0
    %471 = vmatprep.subr.mxu0 0.0
    %472 = vmatpush1.msra.mxu0 0.0
    %473 = vmatprep.subr.mxu0 0.0
    %474 = vmatpush1.msra.mxu0 0.0
    %475 = vmatprep.subr.mxu0 0.0
    %476 = vmatpush1.msra.mxu0 0.0
    %477 = vmatprep.subr.mxu0 0.0
    %478 = vmatpush1.msra.mxu0 0.0
    %479 = vmatprep.subr.mxu0 0.0
    %480 = vmatpush1.msra.mxu0 0.0
    %481 = vmatprep.subr.mxu0 0.0
    %482 = vmatpush1.msra.mxu0 0.0
    %483 = vmatprep.subr.mxu0 0.0
    %484 = vmatpush1.msra.mxu0 0.0
    %485 = vmatprep.subr.mxu0 0.0
    %486 = vmatpush1.msra.mxu0 0.0
    %487 = vmatprep.subr.mxu0 0.0
    %488 = vmatpush1.msra.mxu0 0.0
    %489 = vmatprep.mubr.f32.mxu0 0.0
    %490 = vmatmul.mubr.f32.gmra.mrb[0].mxu0 %v417
    %v491 = vpop.f32.mrb[0].mxu0
    %v492 = vadd.f32 %v423, %v491
    %v493 = vpop.f32.mrb[0].mxu0
    %494 = vmatprep.mubr.f32.mxu0 0.0
    %495 = vmatmul.mubr.f32.gmra.mrb[0].mxu0 %v418
    %v496 = vpop.f32.mrb[0].mxu0
    %v497 = vadd.f32 %v423, %v496
    %v498 = vpop.f32.mrb[0].mxu0
    %499 = vdwg.mxu0
    %500 = vst [vmem:[#allocation15] sm:$0xff] %v492
    %501 = vst [vmem:[#allocation15 + $0x8] sm:$0xf] %v497
    %502 = vst [vmem:[#allocation2] sm:$0xff] %v492
    %503 = vst [vmem:[#allocation2 + $0x8] sm:$0xf] %v497
    %s504 = sld [smem:[#allocation3 + $0x1]]
    %s505 = sadd.f32 %s504, 1.0
    %v506 = vld [vmem:[%s5] sm:$0xff]
    %v507 = vstv %s505
    %v508 = vmul.f32 %v507, %v506
    %v509 = vadd.f32 %v508, %v241
    %s510 = scalar_lea.vmem [#allocation8], 128
    %v511 = vld [vmem:[%s510] sm:$0xff]
    %v512 = vld [vmem:[%s510 + $0x8] sm:$0xff]
    %v513 = vld [vmem:[%s510 + $0x10] sm:$0xff]
    %v514 = vld [vmem:[%s510 + $0x18] sm:$0xff]
    %v515 = vld [vmem:[%s510 + $0x20] sm:$0xff]
    %v516 = vld [vmem:[%s510 + $0x28] sm:$0xff]
    %v517 = vld [vmem:[%s510 + $0x30] sm:$0xff]
    %v518 = vld [vmem:[%s510 + $0x38] sm:$0xff]
    %v519 = vld [vmem:[%s510 + $0x40] sm:$0xff]
    %v520 = vld [vmem:[%s510 + $0x48] sm:$0xff]
    %v521 = vld [vmem:[%s510 + $0x50] sm:$0xff]
    %v522 = vld [vmem:[%s510 + $0x58] sm:$0xff]
    %v523 = vld [vmem:[%s510 + $0x60] sm:$0xff]
    %v524 = vld [vmem:[%s510 + $0x68] sm:$0xff]
    %v525 = vld [vmem:[%s510 + $0x70] sm:$0xff]
    %v526 = vld [vmem:[%s510 + $0x78] sm:$0xff]
    %s527 = scalar_lea.vmem %s9, 1
    %v528 = vld [vmem:[%s527] sm:$0x1]
    %s529 = scalar_lea.vmem %s10, 1
    %v530 = vld [vmem:[%s529] sm:$0x1]
    %s531 = scalar_lea.vmem %s11, 1
    %v532 = vld [vmem:[%s531] sm:$0x1]
    %s533 = scalar_lea.vmem [#allocation10], 128
    %v534 = vld [vmem:[%s533] sm:$0xff]
    %v535 = vld [vmem:[%s533 + $0x8] sm:$0xff]
    %v536 = vld [vmem:[%s533 + $0x10] sm:$0xff]
    %v537 = vld [vmem:[%s533 + $0x18] sm:$0xff]
    %v538 = vld [vmem:[%s533 + $0x20] sm:$0xff]
    %v539 = vld [vmem:[%s533 + $0x28] sm:$0xff]
    %v540 = vld [vmem:[%s533 + $0x30] sm:$0xff]
    %v541 = vld [vmem:[%s533 + $0x38] sm:$0xff]
    %v542 = vld [vmem:[%s533 + $0x40] sm:$0xff]
    %v543 = vld [vmem:[%s533 + $0x48] sm:$0xff]
    %v544 = vld [vmem:[%s533 + $0x50] sm:$0xff]
    %v545 = vld [vmem:[%s533 + $0x58] sm:$0xff]
    %v546 = vld [vmem:[%s533 + $0x60] sm:$0xff]
    %v547 = vld [vmem:[%s533 + $0x68] sm:$0xff]
    %v548 = vld [vmem:[%s533 + $0x70] sm:$0xff]
    %v549 = vld [vmem:[%s533 + $0x78] sm:$0xff]
    %s550 = scalar_lea.vmem %s13, 1
    %v551 = vld [vmem:[%s550] sm:$0x1]
    %v553 = vlaneseq
    %v554 = vshrl.u32 %v553, 7
    %v555 = vsub.s32 0, %v554
    %v556 = vrot.slane %v528, %v555
    %558 = vmatprep.subr.mxu0 0.0
    %559 = vmatpush1.msra.mxu0 %v511
    %560 = vmatprep.subr.mxu0 0.0
    %561 = vmatpush1.msra.mxu0 %v512
    %562 = vmatprep.subr.mxu0 0.0
    %563 = vmatpush1.msra.mxu0 %v513
    %564 = vmatprep.subr.mxu0 0.0
    %565 = vmatpush1.msra.mxu0 %v514
    %566 = vmatprep.subr.mxu0 0.0
    %567 = vmatpush1.msra.mxu0 %v515
    %568 = vmatprep.subr.mxu0 0.0
    %569 = vmatpush1.msra.mxu0 %v516
    %570 = vmatprep.subr.mxu0 0.0
    %571 = vmatpush1.msra.mxu0 %v517
    %572 = vmatprep.subr.mxu0 0.0
    %573 = vmatpush1.msra.mxu0 %v518
    %574 = vmatprep.subr.mxu0 0.0
    %575 = vmatpush1.msra.mxu0 %v519
    %576 = vmatprep.subr.mxu0 0.0
    %577 = vmatpush1.msra.mxu0 %v520
    %578 = vmatprep.subr.mxu0 0.0
    %579 = vmatpush1.msra.mxu0 %v521
    %580 = vmatprep.subr.mxu0 0.0
    %581 = vmatpush1.msra.mxu0 %v522
    %582 = vmatprep.subr.mxu0 0.0
    %583 = vmatpush1.msra.mxu0 %v523
    %584 = vmatprep.subr.mxu0 0.0
    %585 = vmatpush1.msra.mxu0 %v524
    %586 = vmatprep.subr.mxu0 0.0
    %587 = vmatpush1.msra.mxu0 %v525
    %588 = vmatprep.subr.mxu0 0.0
    %589 = vmatpush1.msra.mxu0 %v526
    %590 = vmatprep.subr.mxu0 0.0
    %591 = vmatpush1.msra.mxu0 0.0
    %592 = vmatprep.subr.mxu0 0.0
    %593 = vmatpush1.msra.mxu0 0.0
    %594 = vmatprep.subr.mxu0 0.0
    %595 = vmatpush1.msra.mxu0 0.0
    %596 = vmatprep.subr.mxu0 0.0
    %597 = vmatpush1.msra.mxu0 0.0
    %598 = vmatprep.subr.mxu0 0.0
    %599 = vmatpush1.msra.mxu0 0.0
    %600 = vmatprep.subr.mxu0 0.0
    %601 = vmatpush1.msra.mxu0 0.0
    %602 = vmatprep.subr.mxu0 0.0
    %603 = vmatpush1.msra.mxu0 0.0
    %604 = vmatprep.subr.mxu0 0.0
    %605 = vmatpush1.msra.mxu0 0.0
    %606 = vmatprep.subr.mxu0 0.0
    %607 = vmatpush1.msra.mxu0 0.0
    %608 = vmatprep.subr.mxu0 0.0
    %609 = vmatpush1.msra.mxu0 0.0
    %610 = vmatprep.subr.mxu0 0.0
    %611 = vmatpush1.msra.mxu0 0.0
    %612 = vmatprep.subr.mxu0 0.0
    %613 = vmatpush1.msra.mxu0 0.0
    %614 = vmatprep.subr.mxu0 0.0
    %615 = vmatpush1.msra.mxu0 0.0
    %616 = vmatprep.subr.mxu0 0.0
    %617 = vmatpush1.msra.mxu0 0.0
    %618 = vmatprep.subr.mxu0 0.0
    %619 = vmatpush1.msra.mxu0 0.0
    %620 = vmatprep.subr.mxu0 0.0
    %621 = vmatpush1.msra.mxu0 0.0
    %622 = vmatprep.mubr.f32.mxu0 0.0
    %623 = vmatmul.mubr.f32.gmra.mrb[0].mxu0 %v509
    %v624 = vpop.f32.mrb[0].mxu0
    %v625 = vadd.f32 %v556, %v624
    %v626 = vpop.f32.mrb[0].mxu0
    %627 = vdwg.mxu0
    %v628 = vrot.slane %v625, 4
    %v629 = vadd.f32 %v625, %v628
    %v630 = vrot.slane %v629, 2
    %v631 = vadd.f32 %v629, %v630
    %v632 = vrot.slane %v631, 1
    %v633 = vadd.f32 %v631, %v632
    %v634 = vrcp.pop 8.0
    %v635 = vmul.f32 %v633, %v634
    %v636 = vsub.f32 %v625, %v635
    %v637 = vmul.f32 %v636, %v636
    %v638 = vrot.slane %v637, 4
    %v639 = vadd.f32 %v637, %v638
    %v640 = vrot.slane %v639, 2
    %v641 = vadd.f32 %v639, %v640
    %v642 = vrot.slane %v641, 1
    %v643 = vadd.f32 %v641, %v642
    %v644 = vmul.f32 %v643, %v634
    %v645 = vadd.f32 %v644, 1e-05
    %v646 = vrsqrt.pop %v645
    %v647 = vmul.f32 %v636, %v646
    %v649 = vlaneseq
    %v650 = vshrl.u32 %v649, 7
    %v651 = vsub.s32 0, %v650
    %v652 = vrot.slane %v530, %v651
    %v654 = vmul.f32 %v647, %v652
    %v656 = vlaneseq
    %v657 = vshrl.u32 %v656, 7
    %v658 = vsub.s32 0, %v657
    %v659 = vrot.slane %v532, %v658
    %v661 = vadd.f32 %v654, %v659
    %v662 = vmax.f32 %v661, 0.0
    %v664 = vlaneseq
    %v665 = vshrl.u32 %v664, 7
    %v666 = vsub.s32 0, %v665
    %v667 = vrot.slane %v551, %v666
    %669 = vmatprep.subr.mxu0 0.0
    %670 = vmatpush1.msra.mxu0 %v534
    %671 = vmatprep.subr.mxu0 0.0
    %672 = vmatpush1.msra.mxu0 %v535
    %673 = vmatprep.subr.mxu0 0.0
    %674 = vmatpush1.msra.mxu0 %v536
    %675 = vmatprep.subr.mxu0 0.0
    %676 = vmatpush1.msra.mxu0 %v537
    %677 = vmatprep.subr.mxu0 0.0
    %678 = vmatpush1.msra.mxu0 %v538
    %679 = vmatprep.subr.mxu0 0.0
    %680 = vmatpush1.msra.mxu0 %v539
    %681 = vmatprep.subr.mxu0 0.0
    %682 = vmatpush1.msra.mxu0 %v540
    %683 = vmatprep.subr.mxu0 0.0
    %684 = vmatpush1.msra.mxu0 %v541
    %685 = vmatprep.subr.mxu0 0.0
    %686 = vmatpush1.msra.mxu0 %v542
    %687 = vmatprep.subr.mxu0 0.0
    %688 = vmatpush1.msra.mxu0 %v543
    %689 = vmatprep.subr.mxu0 0.0
    %690 = vmatpush1.msra.mxu0 %v544
    %691 = vmatprep.subr.mxu0 0.0
    %692 = vmatpush1.msra.mxu0 %v545
    %693 = vmatprep.subr.mxu0 0.0
    %694 = vmatpush1.msra.mxu0 %v546
    %695 = vmatprep.subr.mxu0 0.0
    %696 = vmatpush1.msra.mxu0 %v547
    %697 = vmatprep.subr.mxu0 0.0
    %698 = vmatpush1.msra.mxu0 %v548
    %699 = vmatprep.subr.mxu0 0.0
    %700 = vmatpush1.msra.mxu0 %v549
    %701 = vmatprep.subr.mxu0 0.0
    %702 = vmatpush1.msra.mxu0 0.0
    %703 = vmatprep.subr.mxu0 0.0
    %704 = vmatpush1.msra.mxu0 0.0
    %705 = vmatprep.subr.mxu0 0.0
    %706 = vmatpush1.msra.mxu0 0.0
    %707 = vmatprep.subr.mxu0 0.0
    %708 = vmatpush1.msra.mxu0 0.0
    %709 = vmatprep.subr.mxu0 0.0
    %710 = vmatpush1.msra.mxu0 0.0
    %711 = vmatprep.subr.mxu0 0.0
    %712 = vmatpush1.msra.mxu0 0.0
    %713 = vmatprep.subr.mxu0 0.0
    %714 = vmatpush1.msra.mxu0 0.0
    %715 = vmatprep.subr.mxu0 0.0
    %716 = vmatpush1.msra.mxu0 0.0
    %717 = vmatprep.subr.mxu0 0.0
    %718 = vmatpush1.msra.mxu0 0.0
    %719 = vmatprep.subr.mxu0 0.0
    %720 = vmatpush1.msra.mxu0 0.0
    %721 = vmatprep.subr.mxu0 0.0
    %722 = vmatpush1.msra.mxu0 0.0
    %723 = vmatprep.subr.mxu0 0.0
    %724 = vmatpush1.msra.mxu0 0.0
    %725 = vmatprep.subr.mxu0 0.0
    %726 = vmatpush1.msra.mxu0 0.0
    %727 = vmatprep.subr.mxu0 0.0
    %728 = vmatpush1.msra.mxu0 0.0
    %729 = vmatprep.subr.mxu0 0.0
    %730 = vmatpush1.msra.mxu0 0.0
    %731 = vmatprep.subr.mxu0 0.0
    %732 = vmatpush1.msra.mxu0 0.0
    %733 = vmatprep.mubr.f32.mxu0 0.0
    %734 = vmatmul.mubr.f32.gmra.mrb[0].mxu0 %v662
    %v735 = vpop.f32.mrb[0].mxu0
    %v736 = vadd.f32 %v667, %v735
    %v737 = vpop.f32.mrb[0].mxu0
    %738 = vdwg.mxu0
    %739 = vst [vmem:[#allocation17] sm:$0xff] %v736
    %740 = vst [vmem:[#allocation2 + $0x10] sm:$0xff] %v736
    %v741 = vld [vmem:[%s2] sm:$0xff]
    %v742 = vld [vmem:[%s2 + $0x8] sm:$0xff]
    %v743 = vld [vmem:[#allocation2] sm:$0xff]
    %v744 = vld [vmem:[#allocation2 + $0x8] sm:$0xff]
    %v745 = vld [vmem:[#allocation2 + $0x10] sm:$0xff]
    %vm746 = vcmask 195584
    %v748 = vsel %vm746, %v741, 0
    %v751 = vsel %vm746, %v742, 0
    %753 = vmatprep.subr.mxu0 0.0
    %754 = vmatpush1.msra.mxu0 %v743
    %755 = vmatprep.subr.mxu0 0.0
    %756 = vmatpush1.msra.mxu0 %v744
    %757 = vmatprep.subr.mxu0 0.0
    %758 = vmatpush1.msra.mxu0 %v745
    %759 = vmatprep.subr.mxu0 0.0
    %760 = vmatpush1.msra.mxu0 0.0
    %761 = vmatprep.subr.mxu0 0.0
    %762 = vmatpush1.msra.mxu0 0.0
    %763 = vmatprep.subr.mxu0 0.0
    %764 = vmatpush1.msra.mxu0 0.0
    %765 = vmatprep.subr.mxu0 0.0
    %766 = vmatpush1.msra.mxu0 0.0
    %767 = vmatprep.subr.mxu0 0.0
    %768 = vmatpush1.msra.mxu0 0.0
    %769 = vmatprep.subr.mxu0 0.0
    %770 = vmatpush1.msra.mxu0 0.0
    %771 = vmatprep.subr.mxu0 0.0
    %772 = vmatpush1.msra.mxu0 0.0
    %773 = vmatprep.subr.mxu0 0.0
    %774 = vmatpush1.msra.mxu0 0.0
    %775 = vmatprep.subr.mxu0 0.0
    %776 = vmatpush1.msra.mxu0 0.0
    %777 = vmatprep.subr.mxu0 0.0
    %778 = vmatpush1.msra.mxu0 0.0
    %779 = vmatprep.subr.mxu0 0.0
    %780 = vmatpush1.msra.mxu0 0.0
    %781 = vmatprep.subr.mxu0 0.0
    %782 = vmatpush1.msra.mxu0 0.0
    %783 = vmatprep.subr.mxu0 0.0
    %784 = vmatpush1.msra.mxu0 0.0
    %785 = vmatprep.subr.mxu0 0.0
    %786 = vmatpush1.msra.mxu0 0.0
    %787 = vmatprep.subr.mxu0 0.0
    %788 = vmatpush1.msra.mxu0 0.0
    %789 = vmatprep.subr.mxu0 0.0
    %790 = vmatpush1.msra.mxu0 0.0
    %791 = vmatprep.subr.mxu0 0.0
    %792 = vmatpush1.msra.mxu0 0.0
    %793 = vmatprep.subr.mxu0 0.0
    %794 = vmatpush1.msra.mxu0 0.0
    %795 = vmatprep.subr.mxu0 0.0
    %796 = vmatpush1.msra.mxu0 0.0
    %797 = vmatprep.subr.mxu0 0.0
    %798 = vmatpush1.msra.mxu0 0.0
    %799 = vmatprep.subr.mxu0 0.0
    %800 = vmatpush1.msra.mxu0 0.0
    %801 = vmatprep.subr.mxu0 0.0
    %802 = vmatpush1.msra.mxu0 0.0
    %803 = vmatprep.subr.mxu0 0.0
    %804 = vmatpush1.msra.mxu0 0.0
    %805 = vmatprep.subr.mxu0 0.0
    %806 = vmatpush1.msra.mxu0 0.0
    %807 = vmatprep.subr.mxu0 0.0
    %808 = vmatpush1.msra.mxu0 0.0
    %809 = vmatprep.subr.mxu0 0.0
    %810 = vmatpush1.msra.mxu0 0.0
    %811 = vmatprep.subr.mxu0 0.0
    %812 = vmatpush1.msra.mxu0 0.0
    %813 = vmatprep.subr.mxu0 0.0
    %814 = vmatpush1.msra.mxu0 0.0
    %815 = vmatprep.subr.mxu0 0.0
    %816 = vmatpush1.msra.mxu0 0.0
    %817 = vmatprep.mubr.f32.mxu0 0.0
    %818 = vmatmul.mubr.f32.gmra.mrb[0].mxu0 %v748
    %v819 = vpop.f32.mrb[0].mxu0
    %v820 = vadd.f32 0.0, %v819
    %v821 = vpop.f32.mrb[0].mxu0
    %822 = vmatprep.mubr.f32.mxu0 0.0
    %823 = vmatmul.mubr.f32.gmra.mrb[0].mxu0 %v751
    %v824 = vpop.f32.mrb[0].mxu0
    %v825 = vadd.f32 0.0, %v824
    %v826 = vpop.f32.mrb[0].mxu0
    %827 = vdwg.mxu0
    %v828 = vld [vmem:[#allocation7] sm:$0xff]
    %v829 = vld [vmem:[#allocation7 + $0x8] sm:$0xff]
    %v830 = vld [vmem:[#allocation7 + $0x10] sm:$0xff]
    %v831 = vld [vmem:[#allocation7 + $0x18] sm:$0xff]
    %v832 = vld [vmem:[#allocation7 + $0x20] sm:$0xff]
    %v833 = vld [vmem:[#allocation7 + $0x28] sm:$0xff]
    %v834 = vld [vmem:[#allocation7 + $0x30] sm:$0xff]
    %v835 = vld [vmem:[#allocation7 + $0x38] sm:$0xff]
    %v836 = vld [vmem:[#allocation7 + $0x40] sm:$0xff]
    %v837 = vld [vmem:[#allocation7 + $0x48] sm:$0xff]
    %v838 = vld [vmem:[#allocation7 + $0x50] sm:$0xff]
    %v839 = vld [vmem:[#allocation7 + $0x58] sm:$0xff]
    %v840 = vld [vmem:[#allocation7 + $0x60] sm:$0xff]
    %v841 = vld [vmem:[#allocation7 + $0x68] sm:$0xff]
    %v842 = vld [vmem:[#allocation7 + $0x70] sm:$0xff]
    %v843 = vld [vmem:[#allocation7 + $0x78] sm:$0xff]
    %v844 = vld [vmem:[%s7] sm:$0x1]
    %v846 = vlaneseq
    %v847 = vshrl.u32 %v846, 7
    %v848 = vsub.s32 0, %v847
    %v849 = vrot.slane %v844, %v848
    %851 = vmatprep.subr.mxu0 0.0
    %852 = vmatpush1.msra.mxu0 %v828
    %853 = vmatprep.subr.mxu0 0.0
    %854 = vmatpush1.msra.mxu0 %v829
    %855 = vmatprep.subr.mxu0 0.0
    %856 = vmatpush1.msra.mxu0 %v830
    %857 = vmatprep.subr.mxu0 0.0
    %858 = vmatpush1.msra.mxu0 %v831
    %859 = vmatprep.subr.mxu0 0.0
    %860 = vmatpush1.msra.mxu0 %v832
    %861 = vmatprep.subr.mxu0 0.0
    %862 = vmatpush1.msra.mxu0 %v833
    %863 = vmatprep.subr.mxu0 0.0
    %864 = vmatpush1.msra.mxu0 %v834
    %865 = vmatprep.subr.mxu0 0.0
    %866 = vmatpush1.msra.mxu0 %v835
    %867 = vmatprep.subr.mxu0 0.0
    %868 = vmatpush1.msra.mxu0 %v836
    %869 = vmatprep.subr.mxu0 0.0
    %870 = vmatpush1.msra.mxu0 %v837
    %871 = vmatprep.subr.mxu0 0.0
    %872 = vmatpush1.msra.mxu0 %v838
    %873 = vmatprep.subr.mxu0 0.0
    %874 = vmatpush1.msra.mxu0 %v839
    %875 = vmatprep.subr.mxu0 0.0
    %876 = vmatpush1.msra.mxu0 %v840
    %877 = vmatprep.subr.mxu0 0.0
    %878 = vmatpush1.msra.mxu0 %v841
    %879 = vmatprep.subr.mxu0 0.0
    %880 = vmatpush1.msra.mxu0 %v842
    %881 = vmatprep.subr.mxu0 0.0
    %882 = vmatpush1.msra.mxu0 %v843
    %883 = vmatprep.subr.mxu0 0.0
    %884 = vmatpush1.msra.mxu0 0.0
    %885 = vmatprep.subr.mxu0 0.0
    %886 = vmatpush1.msra.mxu0 0.0
    %887 = vmatprep.subr.mxu0 0.0
    %888 = vmatpush1.msra.mxu0 0.0
    %889 = vmatprep.subr.mxu0 0.0
    %890 = vmatpush1.msra.mxu0 0.0
    %891 = vmatprep.subr.mxu0 0.0
    %892 = vmatpush1.msra.mxu0 0.0
    %893 = vmatprep.subr.mxu0 0.0
    %894 = vmatpush1.msra.mxu0 0.0
    %895 = vmatprep.subr.mxu0 0.0
    %896 = vmatpush1.msra.mxu0 0.0
    %897 = vmatprep.subr.mxu0 0.0
    %898 = vmatpush1.msra.mxu0 0.0
    %899 = vmatprep.subr.mxu0 0.0
    %900 = vmatpush1.msra.mxu0 0.0
    %901 = vmatprep.subr.mxu0 0.0
    %902 = vmatpush1.msra.mxu0 0.0
    %903 = vmatprep.subr.mxu0 0.0
    %904 = vmatpush1.msra.mxu0 0.0
    %905 = vmatprep.subr.mxu0 0.0
    %906 = vmatpush1.msra.mxu0 0.0
    %907 = vmatprep.subr.mxu0 0.0
    %908 = vmatpush1.msra.mxu0 0.0
    %909 = vmatprep.subr.mxu0 0.0
    %910 = vmatpush1.msra.mxu0 0.0
    %911 = vmatprep.subr.mxu0 0.0
    %912 = vmatpush1.msra.mxu0 0.0
    %913 = vmatprep.subr.mxu0 0.0
    %914 = vmatpush1.msra.mxu0 0.0
    %915 = vmatprep.mubr.f32.mxu0 0.0
    %916 = vmatmul.mubr.f32.gmra.mrb[0].mxu0 %v149
    %v917 = vpop.f32.mrb[0].mxu0
    %v918 = vadd.f32 %v849, %v917
    %v919 = vpop.f32.mrb[0].mxu0
    %920 = vmatprep.mubr.f32.mxu0 0.0
    %921 = vmatmul.mubr.f32.gmra.mrb[0].mxu0 %v150
    %v922 = vpop.f32.mrb[0].mxu0
    %v923 = vadd.f32 %v849, %v922
    %v924 = vpop.f32.mrb[0].mxu0
    %925 = vdwg.mxu0
    %s926 = sld [smem:[#allocation3 + $0x2]]
    %s927 = sadd.f32 %s926, 1.0
    %v928 = vstv %s927
    %v929 = vmul.f32 %v928, %v918
    %v930 = vmul.f32 %v928, %v923
    %v931 = vadd.f32 %v929, %v820
    %v932 = vadd.f32 %v930, %v825
    %v933 = vld [vmem:[#allocation11] sm:$0xff]
    %v934 = vld [vmem:[#allocation11 + $0x8] sm:$0xff]
    %v935 = vld [vmem:[#allocation11 + $0x10] sm:$0xff]
    %v936 = vld [vmem:[#allocation11 + $0x18] sm:$0xff]
    %v937 = vld [vmem:[#allocation11 + $0x20] sm:$0xff]
    %v938 = vld [vmem:[#allocation11 + $0x28] sm:$0xff]
    %v939 = vld [vmem:[#allocation11 + $0x30] sm:$0xff]
    %v940 = vld [vmem:[#allocation11 + $0x38] sm:$0xff]
    %v941 = vld [vmem:[#allocation11 + $0x40] sm:$0xff]
    %v942 = vld [vmem:[#allocation11 + $0x48] sm:$0xff]
    %v943 = vld [vmem:[#allocation11 + $0x50] sm:$0xff]
    %v944 = vld [vmem:[#allocation11 + $0x58] sm:$0xff]
    %v945 = vld [vmem:[#allocation11 + $0x60] sm:$0xff]
    %v946 = vld [vmem:[#allocation11 + $0x68] sm:$0xff]
    %v947 = vld [vmem:[#allocation11 + $0x70] sm:$0xff]
    %v948 = vld [vmem:[#allocation11 + $0x78] sm:$0xff]
    %v949 = vld [vmem:[%s15] sm:$0x1]
    %v950 = vld [vmem:[%s16] sm:$0x1]
    %v951 = vld [vmem:[%s17] sm:$0x1]
    %v952 = vld [vmem:[#allocation13] sm:$0xff]
    %v953 = vld [vmem:[#allocation13 + $0x8] sm:$0xff]
    %v954 = vld [vmem:[#allocation13 + $0x10] sm:$0xff]
    %v955 = vld [vmem:[#allocation13 + $0x18] sm:$0xff]
    %v956 = vld [vmem:[#allocation13 + $0x20] sm:$0xff]
    %v957 = vld [vmem:[#allocation13 + $0x28] sm:$0xff]
    %v958 = vld [vmem:[#allocation13 + $0x30] sm:$0xff]
    %v959 = vld [vmem:[#allocation13 + $0x38] sm:$0xff]
    %v960 = vld [vmem:[#allocation13 + $0x40] sm:$0xff]
    %v961 = vld [vmem:[#allocation13 + $0x48] sm:$0xff]
    %v962 = vld [vmem:[#allocation13 + $0x50] sm:$0xff]
    %v963 = vld [vmem:[#allocation13 + $0x58] sm:$0xff]
    %v964 = vld [vmem:[#allocation13 + $0x60] sm:$0xff]
    %v965 = vld [vmem:[#allocation13 + $0x68] sm:$0xff]
    %v966 = vld [vmem:[#allocation13 + $0x70] sm:$0xff]
    %v967 = vld [vmem:[#allocation13 + $0x78] sm:$0xff]
    %v968 = vld [vmem:[%s19] sm:$0x1]
    %v970 = vlaneseq
    %v971 = vshrl.u32 %v970, 7
    %v972 = vsub.s32 0, %v971
    %v973 = vrot.slane %v949, %v972
    %975 = vmatprep.subr.mxu0 0.0
    %976 = vmatpush1.msra.mxu0 %v933
    %977 = vmatprep.subr.mxu0 0.0
    %978 = vmatpush1.msra.mxu0 %v934
    %979 = vmatprep.subr.mxu0 0.0
    %980 = vmatpush1.msra.mxu0 %v935
    %981 = vmatprep.subr.mxu0 0.0
    %982 = vmatpush1.msra.mxu0 %v936
    %983 = vmatprep.subr.mxu0 0.0
    %984 = vmatpush1.msra.mxu0 %v937
    %985 = vmatprep.subr.mxu0 0.0
    %986 = vmatpush1.msra.mxu0 %v938
    %987 = vmatprep.subr.mxu0 0.0
    %988 = vmatpush1.msra.mxu0 %v939
    %989 = vmatprep.subr.mxu0 0.0
    %990 = vmatpush1.msra.mxu0 %v940
    %991 = vmatprep.subr.mxu0 0.0
    %992 = vmatpush1.msra.mxu0 %v941
    %993 = vmatprep.subr.mxu0 0.0
    %994 = vmatpush1.msra.mxu0 %v942
    %995 = vmatprep.subr.mxu0 0.0
    %996 = vmatpush1.msra.mxu0 %v943
    %997 = vmatprep.subr.mxu0 0.0
    %998 = vmatpush1.msra.mxu0 %v944
    %999 = vmatprep.subr.mxu0 0.0
    %1000 = vmatpush1.msra.mxu0 %v945
    %1001 = vmatprep.subr.mxu0 0.0
    %1002 = vmatpush1.msra.mxu0 %v946
    %1003 = vmatprep.subr.mxu0 0.0
    %1004 = vmatpush1.msra.mxu0 %v947
    %1005 = vmatprep.subr.mxu0 0.0
    %1006 = vmatpush1.msra.mxu0 %v948
    %1007 = vmatprep.subr.mxu0 0.0
    %1008 = vmatpush1.msra.mxu0 0.0
    %1009 = vmatprep.subr.mxu0 0.0
    %1010 = vmatpush1.msra.mxu0 0.0
    %1011 = vmatprep.subr.mxu0 0.0
    %1012 = vmatpush1.msra.mxu0 0.0
    %1013 = vmatprep.subr.mxu0 0.0
    %1014 = vmatpush1.msra.mxu0 0.0
    %1015 = vmatprep.subr.mxu0 0.0
    %1016 = vmatpush1.msra.mxu0 0.0
    %1017 = vmatprep.subr.mxu0 0.0
    %1018 = vmatpush1.msra.mxu0 0.0
    %1019 = vmatprep.subr.mxu0 0.0
    %1020 = vmatpush1.msra.mxu0 0.0
    %1021 = vmatprep.subr.mxu0 0.0
    %1022 = vmatpush1.msra.mxu0 0.0
    %1023 = vmatprep.subr.mxu0 0.0
    %1024 = vmatpush1.msra.mxu0 0.0
    %1025 = vmatprep.subr.mxu0 0.0
    %1026 = vmatpush1.msra.mxu0 0.0
    %1027 = vmatprep.subr.mxu0 0.0
    %1028 = vmatpush1.msra.mxu0 0.0
    %1029 = vmatprep.subr.mxu0 0.0
    %1030 = vmatpush1.msra.mxu0 0.0
    %1031 = vmatprep.subr.mxu0 0.0
    %1032 = vmatpush1.msra.mxu0 0.0
    %1033 = vmatprep.subr.mxu0 0.0
    %1034 = vmatpush1.msra.mxu0 0.0
    %1035 = vmatprep.subr.mxu0 0.0
    %1036 = vmatpush1.msra.mxu0 0.0
    %1037 = vmatprep.subr.mxu0 0.0
    %1038 = vmatpush1.msra.mxu0 0.0
    %1039 = vmatprep.mubr.f32.mxu0 0.0
    %1040 = vmatmul.mubr.f32.gmra.mrb[0].mxu0 %v931
    %v1041 = vpop.f32.mrb[0].mxu0
    %v1042 = vadd.f32 %v973, %v1041
    %v1043 = vpop.f32.mrb[0].mxu0
    %1044 = vmatprep.mubr.f32.mxu0 0.0
    %1045 = vmatmul.mubr.f32.gmra.mrb[0].mxu0 %v932
    %v1046 = vpop.f32.mrb[0].mxu0
    %v1047 = vadd.f32 %v973, %v1046
    %v1048 = vpop.f32.mrb[0].mxu0
    %1049 = vdwg.mxu0
    %v1050 = vadd.f32 %v1042, %v1047
    %v1051 = vrot.slane %v1050, 4
    %v1052 = vadd.f32 %v1050, %v1051
    %v1053 = vrot.slane %v1052, 2
    %v1054 = vadd.f32 %v1052, %v1053
    %v1055 = vrot.slane %v1054, 1
    %v1056 = vadd.f32 %v1054, %v1055
    %v1057 = vrcp.pop 16.0
    %v1058 = vmul.f32 %v1056, %v1057
    %v1059 = vsub.f32 %v1042, %v1058
    %v1060 = vsub.f32 %v1047, %v1058
    %v1061 = vmul.f32 %v1059, %v1059
    %v1062 = vmul.f32 %v1060, %v1060
    %v1063 = vadd.f32 %v1061, %v1062
    %v1064 = vrot.slane %v1063, 4
    %v1065 = vadd.f32 %v1063, %v1064
    %v1066 = vrot.slane %v1065, 2
    %v1067 = vadd.f32 %v1065, %v1066
    %v1068 = vrot.slane %v1067, 1
    %v1069 = vadd.f32 %v1067, %v1068
    %v1070 = vmul.f32 %v1069, %v1057
    %v1071 = vadd.f32 %v1070, 1e-05
    %v1072 = vrsqrt.pop %v1071
    %v1073 = vmul.f32 %v1059, %v1072
    %v1074 = vmul.f32 %v1060, %v1072
    %v1076 = vlaneseq
    %v1077 = vshrl.u32 %v1076, 7
    %v1078 = vsub.s32 0, %v1077
    %v1079 = vrot.slane %v950, %v1078
    %v1081 = vmul.f32 %v1073, %v1079
    %v1082 = vmul.f32 %v1074, %v1079
    %v1084 = vlaneseq
    %v1085 = vshrl.u32 %v1084, 7
    %v1086 = vsub.s32 0, %v1085
    %v1087 = vrot.slane %v951, %v1086
    %v1089 = vadd.f32 %v1081, %v1087
    %v1090 = vadd.f32 %v1082, %v1087
    %v1091 = vmax.f32 %v1089, 0.0
    %v1092 = vmax.f32 %v1090, 0.0
    %v1094 = vlaneseq
    %v1095 = vshrl.u32 %v1094, 7
    %v1096 = vsub.s32 0, %v1095
    %v1097 = vrot.slane %v968, %v1096
    %1099 = vmatprep.subr.mxu0 0.0
    %1100 = vmatpush1.msra.mxu0 %v952
    %1101 = vmatprep.subr.mxu0 0.0
    %1102 = vmatpush1.msra.mxu0 %v953
    %1103 = vmatprep.subr.mxu0 0.0
    %1104 = vmatpush1.msra.mxu0 %v954
    %1105 = vmatprep.subr.mxu0 0.0
    %1106 = vmatpush1.msra.mxu0 %v955
    %1107 = vmatprep.subr.mxu0 0.0
    %1108 = vmatpush1.msra.mxu0 %v956
    %1109 = vmatprep.subr.mxu0 0.0
    %1110 = vmatpush1.msra.mxu0 %v957
    %1111 = vmatprep.subr.mxu0 0.0
    %1112 = vmatpush1.msra.mxu0 %v958
    %1113 = vmatprep.subr.mxu0 0.0
    %1114 = vmatpush1.msra.mxu0 %v959
    %1115 = vmatprep.subr.mxu0 0.0
    %1116 = vmatpush1.msra.mxu0 %v960
    %1117 = vmatprep.subr.mxu0 0.0
    %1118 = vmatpush1.msra.mxu0 %v961
    %1119 = vmatprep.subr.mxu0 0.0
    %1120 = vmatpush1.msra.mxu0 %v962
    %1121 = vmatprep.subr.mxu0 0.0
    %1122 = vmatpush1.msra.mxu0 %v963
    %1123 = vmatprep.subr.mxu0 0.0
    %1124 = vmatpush1.msra.mxu0 %v964
    %1125 = vmatprep.subr.mxu0 0.0
    %1126 = vmatpush1.msra.mxu0 %v965
    %1127 = vmatprep.subr.mxu0 0.0
    %1128 = vmatpush1.msra.mxu0 %v966
    %1129 = vmatprep.subr.mxu0 0.0
    %1130 = vmatpush1.msra.mxu0 %v967
    %1131 = vmatprep.subr.mxu0 0.0
    %1132 = vmatpush1.msra.mxu0 0.0
    %1133 = vmatprep.subr.mxu0 0.0
    %1134 = vmatpush1.msra.mxu0 0.0
    %1135 = vmatprep.subr.mxu0 0.0
    %1136 = vmatpush1.msra.mxu0 0.0
    %1137 = vmatprep.subr.mxu0 0.0
    %1138 = vmatpush1.msra.mxu0 0.0
    %1139 = vmatprep.subr.mxu0 0.0
    %1140 = vmatpush1.msra.mxu0 0.0
    %1141 = vmatprep.subr.mxu0 0.0
    %1142 = vmatpush1.msra.mxu0 0.0
    %1143 = vmatprep.subr.mxu0 0.0
    %1144 = vmatpush1.msra.mxu0 0.0
    %1145 = vmatprep.subr.mxu0 0.0
    %1146 = vmatpush1.msra.mxu0 0.0
    %1147 = vmatprep.subr.mxu0 0.0
    %1148 = vmatpush1.msra.mxu0 0.0
    %1149 = vmatprep.subr.mxu0 0.0
    %1150 = vmatpush1.msra.mxu0 0.0
    %1151 = vmatprep.subr.mxu0 0.0
    %1152 = vmatpush1.msra.mxu0 0.0
    %1153 = vmatprep.subr.mxu0 0.0
    %1154 = vmatpush1.msra.mxu0 0.0
    %1155 = vmatprep.subr.mxu0 0.0
    %1156 = vmatpush1.msra.mxu0 0.0
    %1157 = vmatprep.subr.mxu0 0.0
    %1158 = vmatpush1.msra.mxu0 0.0
    %1159 = vmatprep.subr.mxu0 0.0
    %1160 = vmatpush1.msra.mxu0 0.0
    %1161 = vmatprep.subr.mxu0 0.0
    %1162 = vmatpush1.msra.mxu0 0.0
    %1163 = vmatprep.mubr.f32.mxu0 0.0
    %1164 = vmatmul.mubr.f32.gmra.mrb[0].mxu0 %v1091
    %v1165 = vpop.f32.mrb[0].mxu0
    %v1166 = vadd.f32 %v1097, %v1165
    %v1167 = vpop.f32.mrb[0].mxu0
    %1168 = vmatprep.mubr.f32.mxu0 0.0
    %1169 = vmatmul.mubr.f32.gmra.mrb[0].mxu0 %v1092
    %v1170 = vpop.f32.mrb[0].mxu0
    %v1171 = vadd.f32 %v1097, %v1170
    %v1172 = vpop.f32.mrb[0].mxu0
    %1173 = vdwg.mxu0
    %1174 = vst [vmem:[#allocation14] sm:$0xff] %v1166
    %1175 = vst [vmem:[#allocation14 + $0x8] sm:$0xff] %v1171
    // Predicated region
    $region106: #{tpu_custom_call.1} parent=1 // pred_check
      _
    $region107: #{tpu_custom_call.1} parent=1 // pred_check_branch
      %1177 = sbr.rel (0) target = $region109
    $region108: #{tpu_custom_call.1} parent=1 // pred_region
      %s1179 = ssub.s32 256, 256
      %1180 = vsyncadd [#allocation5], %s1179
      %s1181 = sshll.u32 [#allocation14], 4
      %s1182 = int_to_ptr.vmem [resolvable:$true] %s1181
      %1187 = dma.vmem_to_hbm [thread:$0]  %s1182, 256, %s20, [#allocation5], 128, 128, 8
    $region109: #{tpu_custom_call.1} parent=1 // pred_fallthru
      _
    // Predicated region
    $region110: #{tpu_custom_call.1} parent=1 // pred_check
      _
    $region111: #{tpu_custom_call.1} parent=1 // pred_check_branch
      %1189 = sbr.rel (0) target = $region113
    $region112: #{tpu_custom_call.1} parent=1 // pred_region
      %s1191 = ssub.s32 256, 256
      %1192 = vsyncadd [#allocation16], %s1191
      %s1193 = sshll.u32 [#allocation15], 4
      %s1194 = int_to_ptr.vmem [resolvable:$true] %s1193
      %1199 = dma.vmem_to_hbm [thread:$0]  %s1194, 256, %s21, [#allocation16], 128, 128, 8
    $region113: #{tpu_custom_call.1} parent=1 // pred_fallthru
      _
    // Predicated region
    $region114: #{tpu_custom_call.1} parent=1 // pred_check
      _
    $region115: #{tpu_custom_call.1} parent=1 // pred_check_branch
      %1201 = sbr.rel (0) target = $region117
    $region116: #{tpu_custom_call.1} parent=1 // pred_region
      %s1203 = ssub.s32 128, 128
      %1204 = vsyncadd [#allocation16], %s1203
      %s1206 = sshll.u32 [#allocation17], 4
      %s1207 = int_to_ptr.vmem [resolvable:$true] %s1206
      %1209 = dma.vmem_to_hbm [thread:$0]  %s1207, 128, %s22, [#allocation16]
    $region117: #{tpu_custom_call.1} parent=1 // pred_fallthru
      _
    // Predicated region
    $region118: #{tpu_custom_call.1} parent=1 // pred_check
      _
    $region119: #{tpu_custom_call.1} parent=1 // pred_check_branch
      %1211 = sbr.rel (0) target = $region121
    $region120: #{tpu_custom_call.1} parent=1 // pred_region
      %1212 = dma.done [#allocation5], 256
    $region121: #{tpu_custom_call.1} parent=1 // pred_fallthru
      _
    // Predicated region
    $region122: #{tpu_custom_call.1} parent=1 // pred_check
      _
    $region123: #{tpu_custom_call.1} parent=1 // pred_check_branch
      %1214 = sbr.rel (0) target = $region125
    $region124: #{tpu_custom_call.1} parent=1 // pred_region
      %1215 = dma.done [#allocation16], 256
    $region125: #{tpu_custom_call.1} parent=1 // pred_fallthru
      _
    // Predicated region
    $region126: #{tpu_custom_call.1} parent=1 // pred_check
      _
    $region127: #{tpu_custom_call.1} parent=1 // pred_check_branch
      %1217 = sbr.rel (0) target = $region129
    $region128: #{tpu_custom_call.1} parent=1 // pred_region
      %1218 = dma.done [#allocation16], 128
    $region129: #{tpu_custom_call.1} parent=1 // pred_fallthru
      _
    %1219 = vsyncpa [#allocation4], 1
    %1220 = vsyncpa [#allocation9], 1
    %1221 = vsyncpa [#allocation12], 1
    %1222 = vsyncpa [#allocation5], 1
    %1223 = vsyncpa [#allocation16], 1
    %1224 = vsyncpa [#allocation6], 1

</llo_original>
